<compile_context>
chip_gen: v5e
topology: v5e:2x2
jax: 0.10.0
libtpu: 0.0.40
codegen_flags: <defaults>
</compile_context>

<pallas_src>
import functools

import jax
import jax.numpy as jnp
from jax.experimental import pallas as pl
from jax.experimental.pallas import tpu as pltpu

LANE = 128


def _round_up(x, m):
    return (x + m - 1) // m * m


# ---------------- wrapper-side weight repacking (lane-aligned gates) --------
def _pad_gate_cols(w, H, HP):
    """(R, 3H) -> (R, 3HP): gate g's H columns are placed at [g*HP, g*HP+H)."""
    R = w.shape[0]
    out = jnp.zeros((R, 3 * HP), w.dtype)
    for g in range(3):
        out = out.at[:, g * HP:g * HP + H].set(w[:, g * H:(g + 1) * H])
    return out


def _pad_rows(w, HP):
    return jnp.pad(w, ((0, HP - w.shape[0]), (0, 0)))


# ------------------------------- Pallas kernel ------------------------------
def _seq2seq_kernel(xsrc_ref, wih_ref, wrec_ref, bias_ref, out_ref, hs_ref,
                    *, input_len, target_len, batch, hp, fp):
    B, HP, FP = batch, hp, fp

    # Off the serial chain: every encoder-step x-projection AND the decoder
    # step-0 x-projection in ONE batched matmul.  The x-side biases (with the
    # r/z hidden biases pre-folded in the wrapper) are added here once.
    gx_both = (jnp.dot(xsrc_ref[...], wih_ref[...],
                       preferred_element_type=jnp.float32)
               + bias_ref[:, 0:6 * HP])                         # (T_in*B, 6HP)

    # Small biases broadcast once (JAX does not CSE broadcast_in_dim).
    enc_bhn = jnp.broadcast_to(bias_ref[:, 9 * HP:10 * HP], (B, HP))
    dec_bhn = jnp.broadcast_to(bias_ref[:, 10 * HP:11 * HP], (B, HP))
    head_bx = jnp.broadcast_to(bias_ref[:, 6 * HP:9 * HP], (B, 3 * HP))

    def gru_update(gx, gh, bhn, h):
        # All slices are 128-lane aligned (HP multiple of 128): pure VPU/EUP,
        # no lane shuffles.  Only the n-gate hidden bias remains on the step
        # (the reset gate multiplies it); r/z hidden biases live in gx already.
        r = jax.nn.sigmoid(gx[:, 0:HP] + gh[:, 0:HP])
        z = jax.nn.sigmoid(gx[:, HP:2 * HP] + gh[:, HP:2 * HP])
        n = jnp.tanh(gx[:, 2 * HP:3 * HP] + r * (gh[:, 2 * HP:3 * HP] + bhn))
        return (1.0 - z) * n + z * h

    # ---- Encoder: exactly one serial matmul per step.  The recurrence weight
    # is read at the point of use so Mosaic need not keep 48 vregs live across
    # the whole unrolled chain.
    h = jnp.zeros((B, HP), jnp.float32)
    for t in range(input_len):                                  # static unroll
        gh = jnp.dot(h, wrec_ref[:, 0:3 * HP],
                     preferred_element_type=jnp.float32)
        h = gru_update(gx_both[t * B:(t + 1) * B, 0:3 * HP], gh, enc_bhn, h)

    # ---- Decoder (eval: feeds back its own output) --------------------------
    # Step 0: x-side projection of the last source frame already sits in
    # gx_both (last B rows, decoder half of the columns).
    gx0 = gx_both[(input_len - 1) * B:input_len * B, 3 * HP:6 * HP]
    gh0 = jnp.dot(h, wrec_ref[:, 6 * HP:9 * HP],
                  preferred_element_type=jnp.float32)
    h = gru_update(gx0, gh0, dec_bhn, h)
    hs_ref[0:B, :] = h

    # Steps 1..T-1: regression head folded into the next input projection, so
    # each step is a single (B,HP)x(HP,6HP) matmul producing [gx | gh].
    for t in range(1, target_len):                              # static unroll
        g = jnp.dot(h, wrec_ref[:, 3 * HP:9 * HP],
                    preferred_element_type=jnp.float32)
        h = gru_update(g[:, 0:3 * HP] + head_bx, g[:, 3 * HP:6 * HP],
                       dec_bhn, h)
        hs_ref[t * B:(t + 1) * B, :] = h

    # Single lane-dense writeback: all regression-head outputs in one matmul
    # over the scratch-resident decoder states, one unmasked 128-lane store.
    out = (jnp.dot(hs_ref[...], wrec_ref[:, 9 * HP:9 * HP + FP],
                   preferred_element_type=jnp.float32)
           + bias_ref[:, 11 * HP:11 * HP + FP])
    out_ref[...] = out.astype(out_ref.dtype)                    # (T_out*B, FP)


# ------------------------------- Wrapper ------------------------------------
def encoder_decoder_forward(X, params, *, input_len, target_len, hidden_dim):
    """X: (B, input_len + target_len, F) float32 -> (B, target_len, F)."""
    B, L, F = X.shape
    assert L == input_len + target_len
    H = hidden_dim
    HP = _round_up(max(H, LANE), LANE)          # gate blocks on 128-lane grid
    FP = _round_up(F, LANE)                     # lane-dense output width

    f32 = lambda a: jnp.asarray(a, jnp.float32)
    enc_wih_t, enc_whh_t = f32(params["enc_wih_t"]), f32(params["enc_whh_t"])
    enc_bih, enc_bhh = f32(params["enc_bih"]), f32(params["enc_bhh"])
    dec_wih_t, dec_whh_t = f32(params["dec_wih_t"]), f32(params["dec_whh_t"])
    dec_bih, dec_bhh = f32(params["dec_bih"]), f32(params["dec_bhh"])
    reg_w_t, reg_b = f32(params["reg_w_t"]), f32(params["reg_b"])

    # Packed input-projection weight: [enc_Wih | dec_Wih]  -> (F, 6HP)
    wih_all = jnp.concatenate(
        [_pad_gate_cols(enc_wih_t, H, HP), _pad_gate_cols(dec_wih_t, H, HP)],
        axis=1)

    # Packed recurrence/readout weight (HP, 9HP+FP):
    #   [enc_Whh | head_W (= reg_W @ dec_Wih, folds the feedback) | dec_Whh |
    #    reg_W padded to FP lanes]
    head_w = reg_w_t @ dec_wih_t                                # (H, 3H)
    w_rec = jnp.concatenate([
        _pad_rows(_pad_gate_cols(enc_whh_t, H, HP), HP),
        _pad_rows(_pad_gate_cols(head_w, H, HP), HP),
        _pad_rows(_pad_gate_cols(dec_whh_t, H, HP), HP),
        jnp.pad(reg_w_t, ((0, HP - H), (0, FP - F))),
    ], axis=1)

    # Packed biases (1, 11HP+FP).  r/z halves of the hidden bias are folded
    # into the x-side bias; b_hn stays separate (reset gate multiplies it).
    def fold_rz(bx, bh):
        return bx + jnp.concatenate(
            [bh[:, :2 * H], jnp.zeros((1, H), bh.dtype)], axis=1)

    enc_bx = fold_rz(enc_bih, enc_bhh)                          # encoder gx bias
    dec_bx0 = fold_rz(dec_bih, dec_bhh)                         # decode step-0 gx
    head_bx = fold_rz(reg_b @ dec_wih_t + dec_bih, dec_bhh)     # decode steps 1+
    bias_all = jnp.concatenate([
        _pad_gate_cols(enc_bx, H, HP),                          # [0, 3HP)
        _pad_gate_cols(dec_bx0, H, HP),                         # [3HP, 6HP)
        _pad_gate_cols(head_bx, H, HP),                         # [6HP, 9HP)
        jnp.pad(enc_bhh[:, 2 * H:], ((0, 0), (0, HP - H))),     # [9HP, 10HP)
        jnp.pad(dec_bhh[:, 2 * H:], ((0, 0), (0, HP - H))),     # [10HP, 11HP)
        jnp.pad(reg_b, ((0, 0), (0, FP - F))),                  # [11HP, 11HP+FP)
    ], axis=1)

    # Time-major, pre-flattened source sequence (the last source frame is just
    # its last B rows; no separate x_last input).
    x_src = jnp.transpose(f32(X)[:, :input_len, :], (1, 0, 2)).reshape(
        input_len * B, F)

    vmem = pl.BlockSpec(memory_space=pltpu.MemorySpace.VMEM)
    kernel = functools.partial(
        _seq2seq_kernel, input_len=input_len, target_len=target_len,
        batch=B, hp=HP, fp=FP)

    out_flat = pl.pallas_call(
        kernel,
        out_shape=jax.ShapeDtypeStruct((target_len * B, FP), jnp.float32),
        in_specs=[vmem] * 4,
        out_specs=vmem,
        scratch_shapes=[pltpu.VMEM((target_len * B, HP), jnp.float32)],
    )(x_src, wih_all, w_rec, bias_all)

    # (T_out*B, FP) -> (B, T_out, F) to match the module's output.
    return jnp.transpose(
        out_flat.reshape(target_len, B, FP)[:, :, :F], (1, 0, 2))


# ---------------------- Pure-JAX reference (for checking) -------------------
def _reference_forward(X, p, *, input_len, target_len, hidden_dim):
    H = hidden_dim
    B = X.shape[0]

    def cell(x, h, wih, whh, bih, bhh):
        gx = x @ wih + bih
        gh = h @ whh + bhh
        r = jax.nn.sigmoid(gx[:, :H] + gh[:, :H])
        z = jax.nn.sigmoid(gx[:, H:2 * H] + gh[:, H:2 * H])
        n = jnp.tanh(gx[:, 2 * H:] + r * gh[:, 2 * H:])
        return (1.0 - z) * n + z * h

    h = jnp.zeros((B, H), jnp.float32)
    for t in range(input_len):
        h = cell(X[:, t, :], h, p["enc_wih_t"], p["enc_whh_t"],
                 p["enc_bih"], p["enc_bhh"])
    dec_x = X[:, input_len - 1, :]
    outs = []
    for _ in range(target_len):
        h = cell(dec_x, h, p["dec_wih_t"], p["dec_whh_t"],
                 p["dec_bih"], p["dec_bhh"])
        out = h @ p["reg_w_t"] + p["reg_b"]
        outs.append(out)
        dec_x = out
    return jnp.stack(outs, axis=1)


# --------------------------------- Main --------------------------------------
if __name__ == "__main__":
    B = 2            # batch
    F = 4            # n_features
    H = 32           # hidden_dim
    INPUT_LEN = 8
    TARGET_LEN = 4
    L = INPUT_LEN + TARGET_LEN

    key = jax.random.PRNGKey(0)
    keys = jax.random.split(key, 12)
    bound = 1.0 / jnp.sqrt(jnp.float32(H))   # PyTorch default GRU init scale

    def u(k, shape):
        return jax.random.uniform(k, shape, jnp.float32, -bound, bound)

    params = {
        # Encoder GRU (n_features=F, hidden=H); weights stored pre-transposed,
        # gate order [r | z | n] as in PyTorch.
        "enc_wih_t": u(keys[0], (F, 3 * H)),
        "enc_whh_t": u(keys[1], (H, 3 * H)),
        "enc_bih":   u(keys[2], (1, 3 * H)),
        "enc_bhh":   u(keys[3], (1, 3 * H)),
        # Decoder GRU.
        "dec_wih_t": u(keys[4], (F, 3 * H)),
        "dec_whh_t": u(keys[5], (H, 3 * H)),
        "dec_bih":   u(keys[6], (1, 3 * H)),
        "dec_bhh":   u(keys[7], (1, 3 * H)),
        # Regression head: Linear(H -> F), stored transposed.
        "reg_w_t":   u(keys[8], (H, F)),
        "reg_b":     u(keys[9], (1, F)),
    }

    X = jax.random.normal(keys[10], (B, L, F), jnp.float32)

    out = encoder_decoder_forward(
        X, params, input_len=INPUT_LEN, target_len=TARGET_LEN, hidden_dim=H)
    out = jax.block_until_ready(out)

    ref = _reference_forward(
        X, params, input_len=INPUT_LEN, target_len=TARGET_LEN, hidden_dim=H)
    assert out.shape == (B, TARGET_LEN, F)
    assert jnp.allclose(out, ref, atol=1e-4, rtol=1e-4), "mismatch vs reference"

    print("KERNEL_OK")
</pallas_src>

<mosaic_0001>
module attributes {stable_mosaic.version = 11 : i64} {
  func.func @_seq2seq_kernel(%arg0: memref<16x4xf32, #tpu.memory_space<vmem>>, %arg1: memref<4x768xf32, #tpu.memory_space<vmem>>, %arg2: memref<128x1280xf32, #tpu.memory_space<vmem>>, %arg3: memref<1x1536xf32, #tpu.memory_space<vmem>>, %arg4: memref<8x128xf32, #tpu.memory_space<vmem>>, %arg5: memref<8x128xf32, #tpu.memory_space<vmem>>) attributes {dimension_semantics = [], scalar_prefetch = 0 : i64, scratch_operands = 1 : i64, tpu.core_type = #tpu.core_type<tc>} {
    %c0 = arith.constant 0 : index
    %c0_0 = arith.constant 0 : index
    %0 = vector.load %arg0[%c0, %c0_0] : memref<16x4xf32, #tpu.memory_space<vmem>>, vector<16x4xf32>
    %c0_1 = arith.constant 0 : index
    %c0_2 = arith.constant 0 : index
    %1 = vector.load %arg1[%c0_1, %c0_2] : memref<4x768xf32, #tpu.memory_space<vmem>>, vector<4x768xf32>
    %cst = arith.constant dense<0.000000e+00> : vector<16x768xf32>
    %2 = tpu.matmul %0, %1, %cst {dimension_numbers = #tpu.dot_dimension_numbers<[1], [0], [0], [1], [0, 0, 1, 1], [], []>} : vector<16x4xf32>, vector<4x768xf32>, vector<16x768xf32> -> vector<16x768xf32>
    %c0_3 = arith.constant 0 : index
    %c0_4 = arith.constant 0 : index
    %3 = vector.load %arg3[%c0_3, %c0_4] : memref<1x1536xf32, #tpu.memory_space<vmem>>, vector<1x768xf32>
    %4 = vector.broadcast %3 : vector<1x768xf32> to vector<16x768xf32>
    %5 = arith.addf %2, %4 : vector<16x768xf32>
    %c0_5 = arith.constant 0 : index
    %c1152 = arith.constant 1152 : index
    %6 = vector.load %arg3[%c0_5, %c1152] : memref<1x1536xf32, #tpu.memory_space<vmem>>, vector<1x128xf32>
    %7 = vector.shape_cast %6 : vector<1x128xf32> to vector<1x128xf32>
    %8 = vector.broadcast %7 : vector<1x128xf32> to vector<2x128xf32>
    %c0_6 = arith.constant 0 : index
    %c1280 = arith.constant 1280 : index
    %9 = vector.load %arg3[%c0_6, %c1280] : memref<1x1536xf32, #tpu.memory_space<vmem>>, vector<1x128xf32>
    %10 = vector.shape_cast %9 : vector<1x128xf32> to vector<1x128xf32>
    %11 = vector.broadcast %10 : vector<1x128xf32> to vector<2x128xf32>
    %c0_7 = arith.constant 0 : index
    %c768 = arith.constant 768 : index
    %12 = vector.load %arg3[%c0_7, %c768] : memref<1x1536xf32, #tpu.memory_space<vmem>>, vector<1x384xf32>
    %13 = vector.shape_cast %12 : vector<1x384xf32> to vector<1x384xf32>
    %14 = vector.broadcast %13 : vector<1x384xf32> to vector<2x384xf32>
    %cst_8 = arith.constant 0.000000e+00 : f32
    %15 = vector.broadcast %cst_8 : f32 to vector<2x128xf32>
    %c0_9 = arith.constant 0 : index
    %c0_10 = arith.constant 0 : index
    %16 = vector.load %arg2[%c0_9, %c0_10] : memref<128x1280xf32, #tpu.memory_space<vmem>>, vector<128x384xf32>
    %cst_11 = arith.constant dense<0.000000e+00> : vector<2x384xf32>
    %17 = tpu.matmul %15, %16, %cst_11 {dimension_numbers = #tpu.dot_dimension_numbers<[1], [0], [0], [1], [0, 0, 1, 1], [], []>} : vector<2x128xf32>, vector<128x384xf32>, vector<2x384xf32> -> vector<2x384xf32>
    %18 = vector.extract_strided_slice %5 {offsets = [0, 0], sizes = [2, 384], strides = [1, 1]} : vector<16x768xf32> to vector<2x384xf32>
    %19 = vector.extract_strided_slice %18 {offsets = [0, 0], sizes = [2, 128], strides = [1, 1]} : vector<2x384xf32> to vector<2x128xf32>
    %20 = vector.extract_strided_slice %17 {offsets = [0, 0], sizes = [2, 128], strides = [1, 1]} : vector<2x384xf32> to vector<2x128xf32>
    %21 = arith.addf %19, %20 : vector<2x128xf32>
    %22 = arith.negf %21 : vector<2x128xf32>
    %23 = math.exp %22 : vector<2x128xf32>
    %cst_12 = arith.constant 1.000000e+00 : f32
    %24 = vector.broadcast %cst_12 : f32 to vector<2x128xf32>
    %25 = arith.addf %24, %23 : vector<2x128xf32>
    %26 = arith.divf %24, %25 : vector<2x128xf32>
    %27 = vector.extract_strided_slice %18 {offsets = [0, 128], sizes = [2, 128], strides = [1, 1]} : vector<2x384xf32> to vector<2x128xf32>
    %28 = vector.extract_strided_slice %17 {offsets = [0, 128], sizes = [2, 128], strides = [1, 1]} : vector<2x384xf32> to vector<2x128xf32>
    %29 = arith.addf %27, %28 : vector<2x128xf32>
    %30 = arith.negf %29 : vector<2x128xf32>
    %31 = math.exp %30 : vector<2x128xf32>
    %cst_13 = arith.constant 1.000000e+00 : f32
    %32 = vector.broadcast %cst_13 : f32 to vector<2x128xf32>
    %33 = arith.addf %32, %31 : vector<2x128xf32>
    %34 = arith.divf %32, %33 : vector<2x128xf32>
    %35 = vector.extract_strided_slice %18 {offsets = [0, 256], sizes = [2, 128], strides = [1, 1]} : vector<2x384xf32> to vector<2x128xf32>
    %36 = vector.extract_strided_slice %17 {offsets = [0, 256], sizes = [2, 128], strides = [1, 1]} : vector<2x384xf32> to vector<2x128xf32>
    %37 = arith.addf %36, %8 : vector<2x128xf32>
    %38 = arith.mulf %26, %37 : vector<2x128xf32>
    %39 = arith.addf %35, %38 : vector<2x128xf32>
    %40 = math.tanh %39 : vector<2x128xf32>
    %cst_14 = arith.constant 1.000000e+00 : f32
    %41 = vector.broadcast %cst_14 : f32 to vector<2x128xf32>
    %42 = arith.subf %41, %34 : vector<2x128xf32>
    %43 = arith.mulf %42, %40 : vector<2x128xf32>
    %44 = arith.mulf %34, %15 : vector<2x128xf32>
    %45 = arith.addf %43, %44 : vector<2x128xf32>
    %c0_15 = arith.constant 0 : index
    %c0_16 = arith.constant 0 : index
    %46 = vector.load %arg2[%c0_15, %c0_16] : memref<128x1280xf32, #tpu.memory_space<vmem>>, vector<128x384xf32>
    %cst_17 = arith.constant dense<0.000000e+00> : vector<2x384xf32>
    %47 = tpu.matmul %45, %46, %cst_17 {dimension_numbers = #tpu.dot_dimension_numbers<[1], [0], [0], [1], [0, 0, 1, 1], [], []>} : vector<2x128xf32>, vector<128x384xf32>, vector<2x384xf32> -> vector<2x384xf32>
    %48 = vector.extract_strided_slice %5 {offsets = [2, 0], sizes = [2, 384], strides = [1, 1]} : vector<16x768xf32> to vector<2x384xf32>
    %49 = vector.extract_strided_slice %48 {offsets = [0, 0], sizes = [2, 128], strides = [1, 1]} : vector<2x384xf32> to vector<2x128xf32>
    %50 = vector.extract_strided_slice %47 {offsets = [0, 0], sizes = [2, 128], strides = [1, 1]} : vector<2x384xf32> to vector<2x128xf32>
    %51 = arith.addf %49, %50 : vector<2x128xf32>
    %52 = arith.negf %51 : vector<2x128xf32>
    %53 = math.exp %52 : vector<2x128xf32>
    %cst_18 = arith.constant 1.000000e+00 : f32
    %54 = vector.broadcast %cst_18 : f32 to vector<2x128xf32>
    %55 = arith.addf %54, %53 : vector<2x128xf32>
    %56 = arith.divf %54, %55 : vector<2x128xf32>
    %57 = vector.extract_strided_slice %48 {offsets = [0, 128], sizes = [2, 128], strides = [1, 1]} : vector<2x384xf32> to vector<2x128xf32>
    %58 = vector.extract_strided_slice %47 {offsets = [0, 128], sizes = [2, 128], strides = [1, 1]} : vector<2x384xf32> to vector<2x128xf32>
    %59 = arith.addf %57, %58 : vector<2x128xf32>
    %60 = arith.negf %59 : vector<2x128xf32>
    %61 = math.exp %60 : vector<2x128xf32>
    %cst_19 = arith.constant 1.000000e+00 : f32
    %62 = vector.broadcast %cst_19 : f32 to vector<2x128xf32>
    %63 = arith.addf %62, %61 : vector<2x128xf32>
    %64 = arith.divf %62, %63 : vector<2x128xf32>
    %65 = vector.extract_strided_slice %48 {offsets = [0, 256], sizes = [2, 128], strides = [1, 1]} : vector<2x384xf32> to vector<2x128xf32>
    %66 = vector.extract_strided_slice %47 {offsets = [0, 256], sizes = [2, 128], strides = [1, 1]} : vector<2x384xf32> to vector<2x128xf32>
    %67 = arith.addf %66, %8 : vector<2x128xf32>
    %68 = arith.mulf %56, %67 : vector<2x128xf32>
    %69 = arith.addf %65, %68 : vector<2x128xf32>
    %70 = math.tanh %69 : vector<2x128xf32>
    %cst_20 = arith.constant 1.000000e+00 : f32
    %71 = vector.broadcast %cst_20 : f32 to vector<2x128xf32>
    %72 = arith.subf %71, %64 : vector<2x128xf32>
    %73 = arith.mulf %72, %70 : vector<2x128xf32>
    %74 = arith.mulf %64, %45 : vector<2x128xf32>
    %75 = arith.addf %73, %74 : vector<2x128xf32>
    %c0_21 = arith.constant 0 : index
    %c0_22 = arith.constant 0 : index
    %76 = vector.load %arg2[%c0_21, %c0_22] : memref<128x1280xf32, #tpu.memory_space<vmem>>, vector<128x384xf32>
    %cst_23 = arith.constant dense<0.000000e+00> : vector<2x384xf32>
    %77 = tpu.matmul %75, %76, %cst_23 {dimension_numbers = #tpu.dot_dimension_numbers<[1], [0], [0], [1], [0, 0, 1, 1], [], []>} : vector<2x128xf32>, vector<128x384xf32>, vector<2x384xf32> -> vector<2x384xf32>
    %78 = vector.extract_strided_slice %5 {offsets = [4, 0], sizes = [2, 384], strides = [1, 1]} : vector<16x768xf32> to vector<2x384xf32>
    %79 = vector.extract_strided_slice %78 {offsets = [0, 0], sizes = [2, 128], strides = [1, 1]} : vector<2x384xf32> to vector<2x128xf32>
    %80 = vector.extract_strided_slice %77 {offsets = [0, 0], sizes = [2, 128], strides = [1, 1]} : vector<2x384xf32> to vector<2x128xf32>
    %81 = arith.addf %79, %80 : vector<2x128xf32>
    %82 = arith.negf %81 : vector<2x128xf32>
    %83 = math.exp %82 : vector<2x128xf32>
    %cst_24 = arith.constant 1.000000e+00 : f32
    %84 = vector.broadcast %cst_24 : f32 to vector<2x128xf32>
    %85 = arith.addf %84, %83 : vector<2x128xf32>
    %86 = arith.divf %84, %85 : vector<2x128xf32>
    %87 = vector.extract_strided_slice %78 {offsets = [0, 128], sizes = [2, 128], strides = [1, 1]} : vector<2x384xf32> to vector<2x128xf32>
    %88 = vector.extract_strided_slice %77 {offsets = [0, 128], sizes = [2, 128], strides = [1, 1]} : vector<2x384xf32> to vector<2x128xf32>
    %89 = arith.addf %87, %88 : vector<2x128xf32>
    %90 = arith.negf %89 : vector<2x128xf32>
    %91 = math.exp %90 : vector<2x128xf32>
    %cst_25 = arith.constant 1.000000e+00 : f32
    %92 = vector.broadcast %cst_25 : f32 to vector<2x128xf32>
    %93 = arith.addf %92, %91 : vector<2x128xf32>
    %94 = arith.divf %92, %93 : vector<2x128xf32>
    %95 = vector.extract_strided_slice %78 {offsets = [0, 256], sizes = [2, 128], strides = [1, 1]} : vector<2x384xf32> to vector<2x128xf32>
    %96 = vector.extract_strided_slice %77 {offsets = [0, 256], sizes = [2, 128], strides = [1, 1]} : vector<2x384xf32> to vector<2x128xf32>
    %97 = arith.addf %96, %8 : vector<2x128xf32>
    %98 = arith.mulf %86, %97 : vector<2x128xf32>
    %99 = arith.addf %95, %98 : vector<2x128xf32>
    %100 = math.tanh %99 : vector<2x128xf32>
    %cst_26 = arith.constant 1.000000e+00 : f32
    %101 = vector.broadcast %cst_26 : f32 to vector<2x128xf32>
    %102 = arith.subf %101, %94 : vector<2x128xf32>
    %103 = arith.mulf %102, %100 : vector<2x128xf32>
    %104 = arith.mulf %94, %75 : vector<2x128xf32>
    %105 = arith.addf %103, %104 : vector<2x128xf32>
    %c0_27 = arith.constant 0 : index
    %c0_28 = arith.constant 0 : index
    %106 = vector.load %arg2[%c0_27, %c0_28] : memref<128x1280xf32, #tpu.memory_space<vmem>>, vector<128x384xf32>
    %cst_29 = arith.constant dense<0.000000e+00> : vector<2x384xf32>
    %107 = tpu.matmul %105, %106, %cst_29 {dimension_numbers = #tpu.dot_dimension_numbers<[1], [0], [0], [1], [0, 0, 1, 1], [], []>} : vector<2x128xf32>, vector<128x384xf32>, vector<2x384xf32> -> vector<2x384xf32>
    %108 = vector.extract_strided_slice %5 {offsets = [6, 0], sizes = [2, 384], strides = [1, 1]} : vector<16x768xf32> to vector<2x384xf32>
    %109 = vector.extract_strided_slice %108 {offsets = [0, 0], sizes = [2, 128], strides = [1, 1]} : vector<2x384xf32> to vector<2x128xf32>
    %110 = vector.extract_strided_slice %107 {offsets = [0, 0], sizes = [2, 128], strides = [1, 1]} : vector<2x384xf32> to vector<2x128xf32>
    %111 = arith.addf %109, %110 : vector<2x128xf32>
    %112 = arith.negf %111 : vector<2x128xf32>
    %113 = math.exp %112 : vector<2x128xf32>
    %cst_30 = arith.constant 1.000000e+00 : f32
    %114 = vector.broadcast %cst_30 : f32 to vector<2x128xf32>
    %115 = arith.addf %114, %113 : vector<2x128xf32>
    %116 = arith.divf %114, %115 : vector<2x128xf32>
    %117 = vector.extract_strided_slice %108 {offsets = [0, 128], sizes = [2, 128], strides = [1, 1]} : vector<2x384xf32> to vector<2x128xf32>
    %118 = vector.extract_strided_slice %107 {offsets = [0, 128], sizes = [2, 128], strides = [1, 1]} : vector<2x384xf32> to vector<2x128xf32>
    %119 = arith.addf %117, %118 : vector<2x128xf32>
    %120 = arith.negf %119 : vector<2x128xf32>
    %121 = math.exp %120 : vector<2x128xf32>
    %cst_31 = arith.constant 1.000000e+00 : f32
    %122 = vector.broadcast %cst_31 : f32 to vector<2x128xf32>
    %123 = arith.addf %122, %121 : vector<2x128xf32>
    %124 = arith.divf %122, %123 : vector<2x128xf32>
    %125 = vector.extract_strided_slice %108 {offsets = [0, 256], sizes = [2, 128], strides = [1, 1]} : vector<2x384xf32> to vector<2x128xf32>
    %126 = vector.extract_strided_slice %107 {offsets = [0, 256], sizes = [2, 128], strides = [1, 1]} : vector<2x384xf32> to vector<2x128xf32>
    %127 = arith.addf %126, %8 : vector<2x128xf32>
    %128 = arith.mulf %116, %127 : vector<2x128xf32>
    %129 = arith.addf %125, %128 : vector<2x128xf32>
    %130 = math.tanh %129 : vector<2x128xf32>
    %cst_32 = arith.constant 1.000000e+00 : f32
    %131 = vector.broadcast %cst_32 : f32 to vector<2x128xf32>
    %132 = arith.subf %131, %124 : vector<2x128xf32>
    %133 = arith.mulf %132, %130 : vector<2x128xf32>
    %134 = arith.mulf %124, %105 : vector<2x128xf32>
    %135 = arith.addf %133, %134 : vector<2x128xf32>
    %c0_33 = arith.constant 0 : index
    %c0_34 = arith.constant 0 : index
    %136 = vector.load %arg2[%c0_33, %c0_34] : memref<128x1280xf32, #tpu.memory_space<vmem>>, vector<128x384xf32>
    %cst_35 = arith.constant dense<0.000000e+00> : vector<2x384xf32>
    %137 = tpu.matmul %135, %136, %cst_35 {dimension_numbers = #tpu.dot_dimension_numbers<[1], [0], [0], [1], [0, 0, 1, 1], [], []>} : vector<2x128xf32>, vector<128x384xf32>, vector<2x384xf32> -> vector<2x384xf32>
    %138 = vector.extract_strided_slice %5 {offsets = [8, 0], sizes = [2, 384], strides = [1, 1]} : vector<16x768xf32> to vector<2x384xf32>
    %139 = vector.extract_strided_slice %138 {offsets = [0, 0], sizes = [2, 128], strides = [1, 1]} : vector<2x384xf32> to vector<2x128xf32>
    %140 = vector.extract_strided_slice %137 {offsets = [0, 0], sizes = [2, 128], strides = [1, 1]} : vector<2x384xf32> to vector<2x128xf32>
    %141 = arith.addf %139, %140 : vector<2x128xf32>
    %142 = arith.negf %141 : vector<2x128xf32>
    %143 = math.exp %142 : vector<2x128xf32>
    %cst_36 = arith.constant 1.000000e+00 : f32
    %144 = vector.broadcast %cst_36 : f32 to vector<2x128xf32>
    %145 = arith.addf %144, %143 : vector<2x128xf32>
    %146 = arith.divf %144, %145 : vector<2x128xf32>
    %147 = vector.extract_strided_slice %138 {offsets = [0, 128], sizes = [2, 128], strides = [1, 1]} : vector<2x384xf32> to vector<2x128xf32>
    %148 = vector.extract_strided_slice %137 {offsets = [0, 128], sizes = [2, 128], strides = [1, 1]} : vector<2x384xf32> to vector<2x128xf32>
    %149 = arith.addf %147, %148 : vector<2x128xf32>
    %150 = arith.negf %149 : vector<2x128xf32>
    %151 = math.exp %150 : vector<2x128xf32>
    %cst_37 = arith.constant 1.000000e+00 : f32
    %152 = vector.broadcast %cst_37 : f32 to vector<2x128xf32>
    %153 = arith.addf %152, %151 : vector<2x128xf32>
    %154 = arith.divf %152, %153 : vector<2x128xf32>
    %155 = vector.extract_strided_slice %138 {offsets = [0, 256], sizes = [2, 128], strides = [1, 1]} : vector<2x384xf32> to vector<2x128xf32>
    %156 = vector.extract_strided_slice %137 {offsets = [0, 256], sizes = [2, 128], strides = [1, 1]} : vector<2x384xf32> to vector<2x128xf32>
    %157 = arith.addf %156, %8 : vector<2x128xf32>
    %158 = arith.mulf %146, %157 : vector<2x128xf32>
    %159 = arith.addf %155, %158 : vector<2x128xf32>
    %160 = math.tanh %159 : vector<2x128xf32>
    %cst_38 = arith.constant 1.000000e+00 : f32
    %161 = vector.broadcast %cst_38 : f32 to vector<2x128xf32>
    %162 = arith.subf %161, %154 : vector<2x128xf32>
    %163 = arith.mulf %162, %160 : vector<2x128xf32>
    %164 = arith.mulf %154, %135 : vector<2x128xf32>
    %165 = arith.addf %163, %164 : vector<2x128xf32>
    %c0_39 = arith.constant 0 : index
    %c0_40 = arith.constant 0 : index
    %166 = vector.load %arg2[%c0_39, %c0_40] : memref<128x1280xf32, #tpu.memory_space<vmem>>, vector<128x384xf32>
    %cst_41 = arith.constant dense<0.000000e+00> : vector<2x384xf32>
    %167 = tpu.matmul %165, %166, %cst_41 {dimension_numbers = #tpu.dot_dimension_numbers<[1], [0], [0], [1], [0, 0, 1, 1], [], []>} : vector<2x128xf32>, vector<128x384xf32>, vector<2x384xf32> -> vector<2x384xf32>
    %168 = vector.extract_strided_slice %5 {offsets = [10, 0], sizes = [2, 384], strides = [1, 1]} : vector<16x768xf32> to vector<2x384xf32>
    %169 = vector.extract_strided_slice %168 {offsets = [0, 0], sizes = [2, 128], strides = [1, 1]} : vector<2x384xf32> to vector<2x128xf32>
    %170 = vector.extract_strided_slice %167 {offsets = [0, 0], sizes = [2, 128], strides = [1, 1]} : vector<2x384xf32> to vector<2x128xf32>
    %171 = arith.addf %169, %170 : vector<2x128xf32>
    %172 = arith.negf %171 : vector<2x128xf32>
    %173 = math.exp %172 : vector<2x128xf32>
    %cst_42 = arith.constant 1.000000e+00 : f32
    %174 = vector.broadcast %cst_42 : f32 to vector<2x128xf32>
    %175 = arith.addf %174, %173 : vector<2x128xf32>
    %176 = arith.divf %174, %175 : vector<2x128xf32>
    %177 = vector.extract_strided_slice %168 {offsets = [0, 128], sizes = [2, 128], strides = [1, 1]} : vector<2x384xf32> to vector<2x128xf32>
    %178 = vector.extract_strided_slice %167 {offsets = [0, 128], sizes = [2, 128], strides = [1, 1]} : vector<2x384xf32> to vector<2x128xf32>
    %179 = arith.addf %177, %178 : vector<2x128xf32>
    %180 = arith.negf %179 : vector<2x128xf32>
    %181 = math.exp %180 : vector<2x128xf32>
    %cst_43 = arith.constant 1.000000e+00 : f32
    %182 = vector.broadcast %cst_43 : f32 to vector<2x128xf32>
    %183 = arith.addf %182, %181 : vector<2x128xf32>
    %184 = arith.divf %182, %183 : vector<2x128xf32>
    %185 = vector.extract_strided_slice %168 {offsets = [0, 256], sizes = [2, 128], strides = [1, 1]} : vector<2x384xf32> to vector<2x128xf32>
    %186 = vector.extract_strided_slice %167 {offsets = [0, 256], sizes = [2, 128], strides = [1, 1]} : vector<2x384xf32> to vector<2x128xf32>
    %187 = arith.addf %186, %8 : vector<2x128xf32>
    %188 = arith.mulf %176, %187 : vector<2x128xf32>
    %189 = arith.addf %185, %188 : vector<2x128xf32>
    %190 = math.tanh %189 : vector<2x128xf32>
    %cst_44 = arith.constant 1.000000e+00 : f32
    %191 = vector.broadcast %cst_44 : f32 to vector<2x128xf32>
    %192 = arith.subf %191, %184 : vector<2x128xf32>
    %193 = arith.mulf %192, %190 : vector<2x128xf32>
    %194 = arith.mulf %184, %165 : vector<2x128xf32>
    %195 = arith.addf %193, %194 : vector<2x128xf32>
    %c0_45 = arith.constant 0 : index
    %c0_46 = arith.constant 0 : index
    %196 = vector.load %arg2[%c0_45, %c0_46] : memref<128x1280xf32, #tpu.memory_space<vmem>>, vector<128x384xf32>
    %cst_47 = arith.constant dense<0.000000e+00> : vector<2x384xf32>
    %197 = tpu.matmul %195, %196, %cst_47 {dimension_numbers = #tpu.dot_dimension_numbers<[1], [0], [0], [1], [0, 0, 1, 1], [], []>} : vector<2x128xf32>, vector<128x384xf32>, vector<2x384xf32> -> vector<2x384xf32>
    %198 = vector.extract_strided_slice %5 {offsets = [12, 0], sizes = [2, 384], strides = [1, 1]} : vector<16x768xf32> to vector<2x384xf32>
    %199 = vector.extract_strided_slice %198 {offsets = [0, 0], sizes = [2, 128], strides = [1, 1]} : vector<2x384xf32> to vector<2x128xf32>
    %200 = vector.extract_strided_slice %197 {offsets = [0, 0], sizes = [2, 128], strides = [1, 1]} : vector<2x384xf32> to vector<2x128xf32>
    %201 = arith.addf %199, %200 : vector<2x128xf32>
    %202 = arith.negf %201 : vector<2x128xf32>
    %203 = math.exp %202 : vector<2x128xf32>
    %cst_48 = arith.constant 1.000000e+00 : f32
    %204 = vector.broadcast %cst_48 : f32 to vector<2x128xf32>
    %205 = arith.addf %204, %203 : vector<2x128xf32>
    %206 = arith.divf %204, %205 : vector<2x128xf32>
    %207 = vector.extract_strided_slice %198 {offsets = [0, 128], sizes = [2, 128], strides = [1, 1]} : vector<2x384xf32> to vector<2x128xf32>
    %208 = vector.extract_strided_slice %197 {offsets = [0, 128], sizes = [2, 128], strides = [1, 1]} : vector<2x384xf32> to vector<2x128xf32>
    %209 = arith.addf %207, %208 : vector<2x128xf32>
    %210 = arith.negf %209 : vector<2x128xf32>
    %211 = math.exp %210 : vector<2x128xf32>
    %cst_49 = arith.constant 1.000000e+00 : f32
    %212 = vector.broadcast %cst_49 : f32 to vector<2x128xf32>
    %213 = arith.addf %212, %211 : vector<2x128xf32>
    %214 = arith.divf %212, %213 : vector<2x128xf32>
    %215 = vector.extract_strided_slice %198 {offsets = [0, 256], sizes = [2, 128], strides = [1, 1]} : vector<2x384xf32> to vector<2x128xf32>
    %216 = vector.extract_strided_slice %197 {offsets = [0, 256], sizes = [2, 128], strides = [1, 1]} : vector<2x384xf32> to vector<2x128xf32>
    %217 = arith.addf %216, %8 : vector<2x128xf32>
    %218 = arith.mulf %206, %217 : vector<2x128xf32>
    %219 = arith.addf %215, %218 : vector<2x128xf32>
    %220 = math.tanh %219 : vector<2x128xf32>
    %cst_50 = arith.constant 1.000000e+00 : f32
    %221 = vector.broadcast %cst_50 : f32 to vector<2x128xf32>
    %222 = arith.subf %221, %214 : vector<2x128xf32>
    %223 = arith.mulf %222, %220 : vector<2x128xf32>
    %224 = arith.mulf %214, %195 : vector<2x128xf32>
    %225 = arith.addf %223, %224 : vector<2x128xf32>
    %c0_51 = arith.constant 0 : index
    %c0_52 = arith.constant 0 : index
    %226 = vector.load %arg2[%c0_51, %c0_52] : memref<128x1280xf32, #tpu.memory_space<vmem>>, vector<128x384xf32>
    %cst_53 = arith.constant dense<0.000000e+00> : vector<2x384xf32>
    %227 = tpu.matmul %225, %226, %cst_53 {dimension_numbers = #tpu.dot_dimension_numbers<[1], [0], [0], [1], [0, 0, 1, 1], [], []>} : vector<2x128xf32>, vector<128x384xf32>, vector<2x384xf32> -> vector<2x384xf32>
    %228 = vector.extract_strided_slice %5 {offsets = [14, 0], sizes = [2, 384], strides = [1, 1]} : vector<16x768xf32> to vector<2x384xf32>
    %229 = vector.extract_strided_slice %228 {offsets = [0, 0], sizes = [2, 128], strides = [1, 1]} : vector<2x384xf32> to vector<2x128xf32>
    %230 = vector.extract_strided_slice %227 {offsets = [0, 0], sizes = [2, 128], strides = [1, 1]} : vector<2x384xf32> to vector<2x128xf32>
    %231 = arith.addf %229, %230 : vector<2x128xf32>
    %232 = arith.negf %231 : vector<2x128xf32>
    %233 = math.exp %232 : vector<2x128xf32>
    %cst_54 = arith.constant 1.000000e+00 : f32
    %234 = vector.broadcast %cst_54 : f32 to vector<2x128xf32>
    %235 = arith.addf %234, %233 : vector<2x128xf32>
    %236 = arith.divf %234, %235 : vector<2x128xf32>
    %237 = vector.extract_strided_slice %228 {offsets = [0, 128], sizes = [2, 128], strides = [1, 1]} : vector<2x384xf32> to vector<2x128xf32>
    %238 = vector.extract_strided_slice %227 {offsets = [0, 128], sizes = [2, 128], strides = [1, 1]} : vector<2x384xf32> to vector<2x128xf32>
    %239 = arith.addf %237, %238 : vector<2x128xf32>
    %240 = arith.negf %239 : vector<2x128xf32>
    %241 = math.exp %240 : vector<2x128xf32>
    %cst_55 = arith.constant 1.000000e+00 : f32
    %242 = vector.broadcast %cst_55 : f32 to vector<2x128xf32>
    %243 = arith.addf %242, %241 : vector<2x128xf32>
    %244 = arith.divf %242, %243 : vector<2x128xf32>
    %245 = vector.extract_strided_slice %228 {offsets = [0, 256], sizes = [2, 128], strides = [1, 1]} : vector<2x384xf32> to vector<2x128xf32>
    %246 = vector.extract_strided_slice %227 {offsets = [0, 256], sizes = [2, 128], strides = [1, 1]} : vector<2x384xf32> to vector<2x128xf32>
    %247 = arith.addf %246, %8 : vector<2x128xf32>
    %248 = arith.mulf %236, %247 : vector<2x128xf32>
    %249 = arith.addf %245, %248 : vector<2x128xf32>
    %250 = math.tanh %249 : vector<2x128xf32>
    %cst_56 = arith.constant 1.000000e+00 : f32
    %251 = vector.broadcast %cst_56 : f32 to vector<2x128xf32>
    %252 = arith.subf %251, %244 : vector<2x128xf32>
    %253 = arith.mulf %252, %250 : vector<2x128xf32>
    %254 = arith.mulf %244, %225 : vector<2x128xf32>
    %255 = arith.addf %253, %254 : vector<2x128xf32>
    %256 = vector.extract_strided_slice %5 {offsets = [14, 384], sizes = [2, 384], strides = [1, 1]} : vector<16x768xf32> to vector<2x384xf32>
    %c0_57 = arith.constant 0 : index
    %c768_58 = arith.constant 768 : index
    %257 = vector.load %arg2[%c0_57, %c768_58] : memref<128x1280xf32, #tpu.memory_space<vmem>>, vector<128x384xf32>
    %cst_59 = arith.constant dense<0.000000e+00> : vector<2x384xf32>
    %258 = tpu.matmul %255, %257, %cst_59 {dimension_numbers = #tpu.dot_dimension_numbers<[1], [0], [0], [1], [0, 0, 1, 1], [], []>} : vector<2x128xf32>, vector<128x384xf32>, vector<2x384xf32> -> vector<2x384xf32>
    %259 = vector.extract_strided_slice %256 {offsets = [0, 0], sizes = [2, 128], strides = [1, 1]} : vector<2x384xf32> to vector<2x128xf32>
    %260 = vector.extract_strided_slice %258 {offsets = [0, 0], sizes = [2, 128], strides = [1, 1]} : vector<2x384xf32> to vector<2x128xf32>
    %261 = arith.addf %259, %260 : vector<2x128xf32>
    %262 = arith.negf %261 : vector<2x128xf32>
    %263 = math.exp %262 : vector<2x128xf32>
    %cst_60 = arith.constant 1.000000e+00 : f32
    %264 = vector.broadcast %cst_60 : f32 to vector<2x128xf32>
    %265 = arith.addf %264, %263 : vector<2x128xf32>
    %266 = arith.divf %264, %265 : vector<2x128xf32>
    %267 = vector.extract_strided_slice %256 {offsets = [0, 128], sizes = [2, 128], strides = [1, 1]} : vector<2x384xf32> to vector<2x128xf32>
    %268 = vector.extract_strided_slice %258 {offsets = [0, 128], sizes = [2, 128], strides = [1, 1]} : vector<2x384xf32> to vector<2x128xf32>
    %269 = arith.addf %267, %268 : vector<2x128xf32>
    %270 = arith.negf %269 : vector<2x128xf32>
    %271 = math.exp %270 : vector<2x128xf32>
    %cst_61 = arith.constant 1.000000e+00 : f32
    %272 = vector.broadcast %cst_61 : f32 to vector<2x128xf32>
    %273 = arith.addf %272, %271 : vector<2x128xf32>
    %274 = arith.divf %272, %273 : vector<2x128xf32>
    %275 = vector.extract_strided_slice %256 {offsets = [0, 256], sizes = [2, 128], strides = [1, 1]} : vector<2x384xf32> to vector<2x128xf32>
    %276 = vector.extract_strided_slice %258 {offsets = [0, 256], sizes = [2, 128], strides = [1, 1]} : vector<2x384xf32> to vector<2x128xf32>
    %277 = arith.addf %276, %11 : vector<2x128xf32>
    %278 = arith.mulf %266, %277 : vector<2x128xf32>
    %279 = arith.addf %275, %278 : vector<2x128xf32>
    %280 = math.tanh %279 : vector<2x128xf32>
    %cst_62 = arith.constant 1.000000e+00 : f32
    %281 = vector.broadcast %cst_62 : f32 to vector<2x128xf32>
    %282 = arith.subf %281, %274 : vector<2x128xf32>
    %283 = arith.mulf %282, %280 : vector<2x128xf32>
    %284 = arith.mulf %274, %255 : vector<2x128xf32>
    %285 = arith.addf %283, %284 : vector<2x128xf32>
    %c0_63 = arith.constant 0 : index
    %c0_64 = arith.constant 0 : index
    %286 = vector.load %arg5[%c0_63, %c0_64] : memref<8x128xf32, #tpu.memory_space<vmem>>, vector<2x128xf32>
    tpu.vector_store %arg5[%c0_63, %c0_64], %285 {strides = array<i32>} : memref<8x128xf32, #tpu.memory_space<vmem>>, vector<2x128xf32>,
    %c0_65 = arith.constant 0 : index
    %c384 = arith.constant 384 : index
    %287 = vector.load %arg2[%c0_65, %c384] : memref<128x1280xf32, #tpu.memory_space<vmem>>, vector<128x768xf32>
    %cst_66 = arith.constant dense<0.000000e+00> : vector<2x768xf32>
    %288 = tpu.matmul %285, %287, %cst_66 {dimension_numbers = #tpu.dot_dimension_numbers<[1], [0], [0], [1], [0, 0, 1, 1], [], []>} : vector<2x128xf32>, vector<128x768xf32>, vector<2x768xf32> -> vector<2x768xf32>
    %289 = vector.extract_strided_slice %288 {offsets = [0, 0], sizes = [2, 384], strides = [1, 1]} : vector<2x768xf32> to vector<2x384xf32>
    %290 = arith.addf %289, %14 : vector<2x384xf32>
    %291 = vector.extract_strided_slice %288 {offsets = [0, 384], sizes = [2, 384], strides = [1, 1]} : vector<2x768xf32> to vector<2x384xf32>
    %292 = vector.extract_strided_slice %290 {offsets = [0, 0], sizes = [2, 128], strides = [1, 1]} : vector<2x384xf32> to vector<2x128xf32>
    %293 = vector.extract_strided_slice %291 {offsets = [0, 0], sizes = [2, 128], strides = [1, 1]} : vector<2x384xf32> to vector<2x128xf32>
    %294 = arith.addf %292, %293 : vector<2x128xf32>
    %295 = arith.negf %294 : vector<2x128xf32>
    %296 = math.exp %295 : vector<2x128xf32>
    %cst_67 = arith.constant 1.000000e+00 : f32
    %297 = vector.broadcast %cst_67 : f32 to vector<2x128xf32>
    %298 = arith.addf %297, %296 : vector<2x128xf32>
    %299 = arith.divf %297, %298 : vector<2x128xf32>
    %300 = vector.extract_strided_slice %290 {offsets = [0, 128], sizes = [2, 128], strides = [1, 1]} : vector<2x384xf32> to vector<2x128xf32>
    %301 = vector.extract_strided_slice %291 {offsets = [0, 128], sizes = [2, 128], strides = [1, 1]} : vector<2x384xf32> to vector<2x128xf32>
    %302 = arith.addf %300, %301 : vector<2x128xf32>
    %303 = arith.negf %302 : vector<2x128xf32>
    %304 = math.exp %303 : vector<2x128xf32>
    %cst_68 = arith.constant 1.000000e+00 : f32
    %305 = vector.broadcast %cst_68 : f32 to vector<2x128xf32>
    %306 = arith.addf %305, %304 : vector<2x128xf32>
    %307 = arith.divf %305, %306 : vector<2x128xf32>
    %308 = vector.extract_strided_slice %290 {offsets = [0, 256], sizes = [2, 128], strides = [1, 1]} : vector<2x384xf32> to vector<2x128xf32>
    %309 = vector.extract_strided_slice %291 {offsets = [0, 256], sizes = [2, 128], strides = [1, 1]} : vector<2x384xf32> to vector<2x128xf32>
    %310 = arith.addf %309, %11 : vector<2x128xf32>
    %311 = arith.mulf %299, %310 : vector<2x128xf32>
    %312 = arith.addf %308, %311 : vector<2x128xf32>
    %313 = math.tanh %312 : vector<2x128xf32>
    %cst_69 = arith.constant 1.000000e+00 : f32
    %314 = vector.broadcast %cst_69 : f32 to vector<2x128xf32>
    %315 = arith.subf %314, %307 : vector<2x128xf32>
    %316 = arith.mulf %315, %313 : vector<2x128xf32>
    %317 = arith.mulf %307, %285 : vector<2x128xf32>
    %318 = arith.addf %316, %317 : vector<2x128xf32>
    %c2 = arith.constant 2 : index
    %c0_70 = arith.constant 0 : index
    %319 = vector.load %arg5[%c2, %c0_70] : memref<8x128xf32, #tpu.memory_space<vmem>>, vector<2x128xf32>
    tpu.vector_store %arg5[%c2, %c0_70], %318 {strides = array<i32>} : memref<8x128xf32, #tpu.memory_space<vmem>>, vector<2x128xf32>,
    %c0_71 = arith.constant 0 : index
    %c384_72 = arith.constant 384 : index
    %320 = vector.load %arg2[%c0_71, %c384_72] : memref<128x1280xf32, #tpu.memory_space<vmem>>, vector<128x768xf32>
    %cst_73 = arith.constant dense<0.000000e+00> : vector<2x768xf32>
    %321 = tpu.matmul %318, %320, %cst_73 {dimension_numbers = #tpu.dot_dimension_numbers<[1], [0], [0], [1], [0, 0, 1, 1], [], []>} : vector<2x128xf32>, vector<128x768xf32>, vector<2x768xf32> -> vector<2x768xf32>
    %322 = vector.extract_strided_slice %321 {offsets = [0, 0], sizes = [2, 384], strides = [1, 1]} : vector<2x768xf32> to vector<2x384xf32>
    %323 = arith.addf %322, %14 : vector<2x384xf32>
    %324 = vector.extract_strided_slice %321 {offsets = [0, 384], sizes = [2, 384], strides = [1, 1]} : vector<2x768xf32> to vector<2x384xf32>
    %325 = vector.extract_strided_slice %323 {offsets = [0, 0], sizes = [2, 128], strides = [1, 1]} : vector<2x384xf32> to vector<2x128xf32>
    %326 = vector.extract_strided_slice %324 {offsets = [0, 0], sizes = [2, 128], strides = [1, 1]} : vector<2x384xf32> to vector<2x128xf32>
    %327 = arith.addf %325, %326 : vector<2x128xf32>
    %328 = arith.negf %327 : vector<2x128xf32>
    %329 = math.exp %328 : vector<2x128xf32>
    %cst_74 = arith.constant 1.000000e+00 : f32
    %330 = vector.broadcast %cst_74 : f32 to vector<2x128xf32>
    %331 = arith.addf %330, %329 : vector<2x128xf32>
    %332 = arith.divf %330, %331 : vector<2x128xf32>
    %333 = vector.extract_strided_slice %323 {offsets = [0, 128], sizes = [2, 128], strides = [1, 1]} : vector<2x384xf32> to vector<2x128xf32>
    %334 = vector.extract_strided_slice %324 {offsets = [0, 128], sizes = [2, 128], strides = [1, 1]} : vector<2x384xf32> to vector<2x128xf32>
    %335 = arith.addf %333, %334 : vector<2x128xf32>
    %336 = arith.negf %335 : vector<2x128xf32>
    %337 = math.exp %336 : vector<2x128xf32>
    %cst_75 = arith.constant 1.000000e+00 : f32
    %338 = vector.broadcast %cst_75 : f32 to vector<2x128xf32>
    %339 = arith.addf %338, %337 : vector<2x128xf32>
    %340 = arith.divf %338, %339 : vector<2x128xf32>
    %341 = vector.extract_strided_slice %323 {offsets = [0, 256], sizes = [2, 128], strides = [1, 1]} : vector<2x384xf32> to vector<2x128xf32>
    %342 = vector.extract_strided_slice %324 {offsets = [0, 256], sizes = [2, 128], strides = [1, 1]} : vector<2x384xf32> to vector<2x128xf32>
    %343 = arith.addf %342, %11 : vector<2x128xf32>
    %344 = arith.mulf %332, %343 : vector<2x128xf32>
    %345 = arith.addf %341, %344 : vector<2x128xf32>
    %346 = math.tanh %345 : vector<2x128xf32>
    %cst_76 = arith.constant 1.000000e+00 : f32
    %347 = vector.broadcast %cst_76 : f32 to vector<2x128xf32>
    %348 = arith.subf %347, %340 : vector<2x128xf32>
    %349 = arith.mulf %348, %346 : vector<2x128xf32>
    %350 = arith.mulf %340, %318 : vector<2x128xf32>
    %351 = arith.addf %349, %350 : vector<2x128xf32>
    %c4 = arith.constant 4 : index
    %c0_77 = arith.constant 0 : index
    %352 = vector.load %arg5[%c4, %c0_77] : memref<8x128xf32, #tpu.memory_space<vmem>>, vector<2x128xf32>
    tpu.vector_store %arg5[%c4, %c0_77], %351 {strides = array<i32>} : memref<8x128xf32, #tpu.memory_space<vmem>>, vector<2x128xf32>,
    %c0_78 = arith.constant 0 : index
    %c384_79 = arith.constant 384 : index
    %353 = vector.load %arg2[%c0_78, %c384_79] : memref<128x1280xf32, #tpu.memory_space<vmem>>, vector<128x768xf32>
    %cst_80 = arith.constant dense<0.000000e+00> : vector<2x768xf32>
    %354 = tpu.matmul %351, %353, %cst_80 {dimension_numbers = #tpu.dot_dimension_numbers<[1], [0], [0], [1], [0, 0, 1, 1], [], []>} : vector<2x128xf32>, vector<128x768xf32>, vector<2x768xf32> -> vector<2x768xf32>
    %355 = vector.extract_strided_slice %354 {offsets = [0, 0], sizes = [2, 384], strides = [1, 1]} : vector<2x768xf32> to vector<2x384xf32>
    %356 = arith.addf %355, %14 : vector<2x384xf32>
    %357 = vector.extract_strided_slice %354 {offsets = [0, 384], sizes = [2, 384], strides = [1, 1]} : vector<2x768xf32> to vector<2x384xf32>
    %358 = vector.extract_strided_slice %356 {offsets = [0, 0], sizes = [2, 128], strides = [1, 1]} : vector<2x384xf32> to vector<2x128xf32>
    %359 = vector.extract_strided_slice %357 {offsets = [0, 0], sizes = [2, 128], strides = [1, 1]} : vector<2x384xf32> to vector<2x128xf32>
    %360 = arith.addf %358, %359 : vector<2x128xf32>
    %361 = arith.negf %360 : vector<2x128xf32>
    %362 = math.exp %361 : vector<2x128xf32>
    %cst_81 = arith.constant 1.000000e+00 : f32
    %363 = vector.broadcast %cst_81 : f32 to vector<2x128xf32>
    %364 = arith.addf %363, %362 : vector<2x128xf32>
    %365 = arith.divf %363, %364 : vector<2x128xf32>
    %366 = vector.extract_strided_slice %356 {offsets = [0, 128], sizes = [2, 128], strides = [1, 1]} : vector<2x384xf32> to vector<2x128xf32>
    %367 = vector.extract_strided_slice %357 {offsets = [0, 128], sizes = [2, 128], strides = [1, 1]} : vector<2x384xf32> to vector<2x128xf32>
    %368 = arith.addf %366, %367 : vector<2x128xf32>
    %369 = arith.negf %368 : vector<2x128xf32>
    %370 = math.exp %369 : vector<2x128xf32>
    %cst_82 = arith.constant 1.000000e+00 : f32
    %371 = vector.broadcast %cst_82 : f32 to vector<2x128xf32>
    %372 = arith.addf %371, %370 : vector<2x128xf32>
    %373 = arith.divf %371, %372 : vector<2x128xf32>
    %374 = vector.extract_strided_slice %356 {offsets = [0, 256], sizes = [2, 128], strides = [1, 1]} : vector<2x384xf32> to vector<2x128xf32>
    %375 = vector.extract_strided_slice %357 {offsets = [0, 256], sizes = [2, 128], strides = [1, 1]} : vector<2x384xf32> to vector<2x128xf32>
    %376 = arith.addf %375, %11 : vector<2x128xf32>
    %377 = arith.mulf %365, %376 : vector<2x128xf32>
    %378 = arith.addf %374, %377 : vector<2x128xf32>
    %379 = math.tanh %378 : vector<2x128xf32>
    %cst_83 = arith.constant 1.000000e+00 : f32
    %380 = vector.broadcast %cst_83 : f32 to vector<2x128xf32>
    %381 = arith.subf %380, %373 : vector<2x128xf32>
    %382 = arith.mulf %381, %379 : vector<2x128xf32>
    %383 = arith.mulf %373, %351 : vector<2x128xf32>
    %384 = arith.addf %382, %383 : vector<2x128xf32>
    %c6 = arith.constant 6 : index
    %c0_84 = arith.constant 0 : index
    %385 = vector.load %arg5[%c6, %c0_84] : memref<8x128xf32, #tpu.memory_space<vmem>>, vector<2x128xf32>
    tpu.vector_store %arg5[%c6, %c0_84], %384 {strides = array<i32>} : memref<8x128xf32, #tpu.memory_space<vmem>>, vector<2x128xf32>,
    %c0_85 = arith.constant 0 : index
    %c0_86 = arith.constant 0 : index
    %386 = vector.load %arg5[%c0_85, %c0_86] : memref<8x128xf32, #tpu.memory_space<vmem>>, vector<8x128xf32>
    %c0_87 = arith.constant 0 : index
    %c1152_88 = arith.constant 1152 : index
    %387 = vector.load %arg2[%c0_87, %c1152_88] : memref<128x1280xf32, #tpu.memory_space<vmem>>, vector<128x128xf32>
    %cst_89 = arith.constant dense<0.000000e+00> : vector<8x128xf32>
    %388 = tpu.matmul %386, %387, %cst_89 {dimension_numbers = #tpu.dot_dimension_numbers<[1], [0], [0], [1], [0, 0, 1, 1], [], []>} : vector<8x128xf32>, vector<128x128xf32>, vector<8x128xf32> -> vector<8x128xf32>
    %c0_90 = arith.constant 0 : index
    %c1408 = arith.constant 1408 : index
    %389 = vector.load %arg3[%c0_90, %c1408] : memref<1x1536xf32, #tpu.memory_space<vmem>>, vector<1x128xf32>
    %390 = vector.broadcast %389 : vector<1x128xf32> to vector<8x128xf32>
    %391 = arith.addf %388, %390 : vector<8x128xf32>
    %c0_91 = arith.constant 0 : index
    %c0_92 = arith.constant 0 : index
    %392 = vector.load %arg4[%c0_91, %c0_92] : memref<8x128xf32, #tpu.memory_space<vmem>>, vector<8x128xf32>
    tpu.vector_store %arg4[%c0_91, %c0_92], %391 {strides = array<i32>} : memref<8x128xf32, #tpu.memory_space<vmem>>, vector<8x128xf32>,
    return
  }
}

</mosaic_0001>

<llo_original>
// kernel: tpu_custom_call.1
$region0: #{tpu_custom_call.1}
  #allocation0 [shape = 'u32[]', space=smem, size = 0x4, offset = 0x4, fixed_abs, tag = 'smem constant byte address 0x4 - core index']
  #allocation1 [shape = 'u32[72,128]{1,0:T(1,128)}', space=vmem, size = 0x9000, scoped, tag = 'internal scratch']
  #allocation2 [shape = 'f32[8,128]{1,0:T(8,128)}', space=vmem, size = 0x1000, scoped, tag = 'scratch operand']
  %s0 = inlined_call_operand.vmem [shape: f32[16,4], index: 0, kind: input, shape index: {}]
  %s1 = inlined_call_operand.hbm [shape: f32[4,768], index: 1, kind: input, shape index: {}]
  %s2 = inlined_call_operand.hbm [shape: f32[128,1280], index: 2, kind: input, shape index: {}]
  %s3 = inlined_call_operand.vmem [shape: f32[1,1536], index: 3, kind: input, shape index: {}]
  %s4 = inlined_call_operand.hbm [shape: f32[8,128], index: 4, kind: output, shape index: {}]
  %s5 = sld [smem:[#allocation0]]
  $region34: #{tpu_custom_call.1} parent=0
    _
  %s7 = ssub.s32 1, %s5
  %s8 = scalar_select 0, %s7, %s5
  $region1: #{tpu_custom_call.1} parent=0
    #allocation3 [shape = 'u8[12288]{0}', space=vmem, size = 0x3000, scoped, tag = 'input window, operand 1, single buffered']
    #allocation4 [shape = 's32[1]{0}', space=sflag, size = 0x4, scoped, tag = 'scoped memory for tpu_custom_call.1']
    #allocation5 [shape = 's32[1]{0}', space=sflag, size = 0x4, scoped, tag = 'scoped memory for tpu_custom_call.1']
    #allocation6 [shape = 'u8[655360]{0}', space=vmem, size = 0xa0000, scoped, tag = 'input window, operand 2, single buffered']
    #allocation7 [shape = 's32[1]{0}', space=sflag, size = 0x4, scoped, tag = 'scoped memory for tpu_custom_call.1']
    #allocation8 [shape = 'u8[4096]{0}', space=vmem, size = 0x1000, scoped, tag = 'output window, operand 0, single buffered']
    %9 = vsyncpa [#allocation4], 0
    %10 = vsyncpa [#allocation7], 0
    %11 = vsyncpa [#allocation5], 0
    // Predicated region
    $region2: #{tpu_custom_call.1} parent=1 // pred_check
      _
    $region3: #{tpu_custom_call.1} parent=1 // pred_check_branch
      %13 = sbr.rel (0) target = $region5
    $region4: #{tpu_custom_call.1} parent=1 // pred_region
      _
    $region5: #{tpu_custom_call.1} parent=1 // pred_fallthru
      _
    // Predicated region
    $region6: #{tpu_custom_call.1} parent=1 // pred_check
      _
    $region7: #{tpu_custom_call.1} parent=1 // pred_check_branch
      %15 = sbr.rel (0) target = $region9
    $region8: #{tpu_custom_call.1} parent=1 // pred_region
      %17 = vsyncadd [#allocation4], 0
      %s19 = sshll.u32 %s1, 4
      %s20 = int_to_ptr.hbm [resolvable:$true] %s19
      %s21 = sshll.u32 [#allocation3], 4
      %s22 = int_to_ptr.vmem [resolvable:$true] %s21
      %24 = dma.hbm_to_vmem [thread:$0]  %s20, 384, %s22, [#allocation4]
    $region9: #{tpu_custom_call.1} parent=1 // pred_fallthru
      _
    // Predicated region
    $region10: #{tpu_custom_call.1} parent=1 // pred_check
      _
    $region11: #{tpu_custom_call.1} parent=1 // pred_check_branch
      %26 = sbr.rel (0) target = $region13
    $region12: #{tpu_custom_call.1} parent=1 // pred_region
      %28 = vsyncadd [#allocation7], 0
      %s29 = sshll.u32 %s2, 4
      %s30 = int_to_ptr.hbm [resolvable:$true] %s29
      %s31 = sshll.u32 [#allocation6], 4
      %s32 = int_to_ptr.vmem [resolvable:$true] %s31
      %37 = dma.hbm_to_vmem [thread:$0]  %s30, 20480, %s32, [#allocation7], 1280, 1280, 80
    $region13: #{tpu_custom_call.1} parent=1 // pred_fallthru
      _
    // Predicated region
    $region14: #{tpu_custom_call.1} parent=1 // pred_check
      _
    $region15: #{tpu_custom_call.1} parent=1 // pred_check_branch
      %39 = sbr.rel (0) target = $region17
    $region16: #{tpu_custom_call.1} parent=1 // pred_region
      _
    $region17: #{tpu_custom_call.1} parent=1 // pred_fallthru
      _
    // Predicated region
    $region18: #{tpu_custom_call.1} parent=1 // pred_check
      _
    $region19: #{tpu_custom_call.1} parent=1 // pred_check_branch
      %41 = sbr.rel (0) target = $region21
    $region20: #{tpu_custom_call.1} parent=1 // pred_region
      %43 = dma.done [#allocation4], 384
    $region21: #{tpu_custom_call.1} parent=1 // pred_fallthru
      _
    // Predicated region
    $region22: #{tpu_custom_call.1} parent=1 // pred_check
      _
    $region23: #{tpu_custom_call.1} parent=1 // pred_check_branch
      %45 = sbr.rel (0) target = $region25
    $region24: #{tpu_custom_call.1} parent=1 // pred_region
      %47 = dma.done [#allocation7], 20480
    $region25: #{tpu_custom_call.1} parent=1 // pred_fallthru
      _
    %v48 = vld [vmem:[%s0] sm:$0xff]
    %v49 = vld [vmem:[%s0 + $0x8] sm:$0xff]
    %v50 = vld [vmem:[#allocation3] sm:$0xff]
    %v51 = vld [vmem:[#allocation3 + $0x8] sm:$0xff]
    %v52 = vld [vmem:[#allocation3 + $0x10] sm:$0xff]
    %v53 = vld [vmem:[%s3] sm:$0x3f]
    %v55 = vperm.slane %v53, 0
    %v56 = vperm.slane %v53, 1
    %v57 = vperm.slane %v53, 2
    %v58 = vperm.slane %v53, 3
    %v59 = vperm.slane %v53, 4
    %v60 = vperm.slane %v53, 5
    %70 = vst [vmem:[#allocation1] ss:$2 sm:$0xff] %v50
    %s71 = scalar_lea.vmem [#allocation1], 16
    %72 = vst [vmem:[%s71] ss:$2 sm:$0xff] %v51
    %s73 = scalar_lea.vmem [#allocation1], 32
    %74 = vst [vmem:[%s73] ss:$2 sm:$0xff] %v52
    %v75 = vld.sshfl [vmem:[#allocation1] sm:$0xff pattern:$0x75316420]
    %v76 = vld.sshfl [vmem:[#allocation1 + $0x8] sm:$0xff pattern:$0x75316420]
    %v77 = vld.sshfl [vmem:[#allocation1 + $0x10] sm:$0xff pattern:$0x75316420]
    %v78 = vld.sshfl [vmem:[#allocation1 + $0x18] sm:$0xff pattern:$0x75316420]
    %v79 = vld.sshfl [vmem:[#allocation1 + $0x20] sm:$0xff pattern:$0x75316420]
    %v80 = vld.sshfl [vmem:[#allocation1 + $0x28] sm:$0xff pattern:$0x75316420]
    %vm81 = vcmask 31744
    %v83 = vsel %vm81, %v48, 0
    %v86 = vsel %vm81, %v49, 0
    %vm88 = vcmask 1043456
    %v89 = vsel %vm88, %v75, 0
    %v91 = vsel %vm88, %v76, 0
    %v93 = vsel %vm88, %v77, 0
    %v95 = vsel %vm88, %v78, 0
    %v97 = vsel %vm88, %v79, 0
    %v99 = vsel %vm88, %v80, 0
    %101 = vmatpush.msra.mxu0 0.0
    %102 = vmatpush.msra.mxu0 0.0
    %103 = vmatpush.msra.mxu0 0.0
    %104 = vmatpush.msra.mxu0 0.0
    %105 = vmatpush.msra.mxu0 0.0
    %106 = vmatpush.msra.mxu0 0.0
    %107 = vmatpush.msra.mxu0 0.0
    %108 = vmatpush.msra.mxu0 0.0
    %109 = vmatpush.msra.mxu0 0.0
    %110 = vmatpush.msra.mxu0 0.0
    %111 = vmatpush.msra.mxu0 0.0
    %112 = vmatpush.msra.mxu0 0.0
    %113 = vmatpush.msra.mxu0 0.0
    %114 = vmatpush.msra.mxu0 0.0
    %115 = vmatpush.msra.mxu0 0.0
    %116 = vmatpush.msra.mxu0 %v89
    %117 = vmatmul.f32.gmra.mxu0 %v83
    %v118 = vpop.f32.mrf.mxu0
    %v119 = vadd.f32 %v55, %v118
    %120 = vmatmul.f32.gmra.mxu0 %v86
    %v121 = vpop.f32.mrf.mxu0
    %v122 = vadd.f32 %v55, %v121
    %123 = vdwg.mxu0
    %124 = vmatpush.msra.mxu0 0.0
    %125 = vmatpush.msra.mxu0 0.0
    %126 = vmatpush.msra.mxu0 0.0
    %127 = vmatpush.msra.mxu0 0.0
    %128 = vmatpush.msra.mxu0 0.0
    %129 = vmatpush.msra.mxu0 0.0
    %130 = vmatpush.msra.mxu0 0.0
    %131 = vmatpush.msra.mxu0 0.0
    %132 = vmatpush.msra.mxu0 0.0
    %133 = vmatpush.msra.mxu0 0.0
    %134 = vmatpush.msra.mxu0 0.0
    %135 = vmatpush.msra.mxu0 0.0
    %136 = vmatpush.msra.mxu0 0.0
    %137 = vmatpush.msra.mxu0 0.0
    %138 = vmatpush.msra.mxu0 0.0
    %139 = vmatpush.msra.mxu0 %v91
    %140 = vmatmul.f32.gmra.mxu0 %v83
    %v141 = vpop.f32.mrf.mxu0
    %v142 = vadd.f32 %v56, %v141
    %143 = vmatmul.f32.gmra.mxu0 %v86
    %v144 = vpop.f32.mrf.mxu0
    %v145 = vadd.f32 %v56, %v144
    %146 = vdwg.mxu0
    %147 = vmatpush.msra.mxu0 0.0
    %148 = vmatpush.msra.mxu0 0.0
    %149 = vmatpush.msra.mxu0 0.0
    %150 = vmatpush.msra.mxu0 0.0
    %151 = vmatpush.msra.mxu0 0.0
    %152 = vmatpush.msra.mxu0 0.0
    %153 = vmatpush.msra.mxu0 0.0
    %154 = vmatpush.msra.mxu0 0.0
    %155 = vmatpush.msra.mxu0 0.0
    %156 = vmatpush.msra.mxu0 0.0
    %157 = vmatpush.msra.mxu0 0.0
    %158 = vmatpush.msra.mxu0 0.0
    %159 = vmatpush.msra.mxu0 0.0
    %160 = vmatpush.msra.mxu0 0.0
    %161 = vmatpush.msra.mxu0 0.0
    %162 = vmatpush.msra.mxu0 %v93
    %163 = vmatmul.f32.gmra.mxu0 %v83
    %v164 = vpop.f32.mrf.mxu0
    %v165 = vadd.f32 %v57, %v164
    %166 = vmatmul.f32.gmra.mxu0 %v86
    %v167 = vpop.f32.mrf.mxu0
    %v168 = vadd.f32 %v57, %v167
    %169 = vdwg.mxu0
    %170 = vmatpush.msra.mxu0 0.0
    %171 = vmatpush.msra.mxu0 0.0
    %172 = vmatpush.msra.mxu0 0.0
    %173 = vmatpush.msra.mxu0 0.0
    %174 = vmatpush.msra.mxu0 0.0
    %175 = vmatpush.msra.mxu0 0.0
    %176 = vmatpush.msra.mxu0 0.0
    %177 = vmatpush.msra.mxu0 0.0
    %178 = vmatpush.msra.mxu0 0.0
    %179 = vmatpush.msra.mxu0 0.0
    %180 = vmatpush.msra.mxu0 0.0
    %181 = vmatpush.msra.mxu0 0.0
    %182 = vmatpush.msra.mxu0 0.0
    %183 = vmatpush.msra.mxu0 0.0
    %184 = vmatpush.msra.mxu0 0.0
    %185 = vmatpush.msra.mxu0 %v95
    %186 = vmatmul.f32.gmra.mxu0 %v83
    %v187 = vpop.f32.mrf.mxu0
    %188 = vmatmul.f32.gmra.mxu0 %v86
    %v189 = vpop.f32.mrf.mxu0
    %v190 = vadd.f32 %v58, %v189
    %191 = vdwg.mxu0
    %192 = vmatpush.msra.mxu0 0.0
    %193 = vmatpush.msra.mxu0 0.0
    %194 = vmatpush.msra.mxu0 0.0
    %195 = vmatpush.msra.mxu0 0.0
    %196 = vmatpush.msra.mxu0 0.0
    %197 = vmatpush.msra.mxu0 0.0
    %198 = vmatpush.msra.mxu0 0.0
    %199 = vmatpush.msra.mxu0 0.0
    %200 = vmatpush.msra.mxu0 0.0
    %201 = vmatpush.msra.mxu0 0.0
    %202 = vmatpush.msra.mxu0 0.0
    %203 = vmatpush.msra.mxu0 0.0
    %204 = vmatpush.msra.mxu0 0.0
    %205 = vmatpush.msra.mxu0 0.0
    %206 = vmatpush.msra.mxu0 0.0
    %207 = vmatpush.msra.mxu0 %v97
    %208 = vmatmul.f32.gmra.mxu0 %v83
    %v209 = vpop.f32.mrf.mxu0
    %210 = vmatmul.f32.gmra.mxu0 %v86
    %v211 = vpop.f32.mrf.mxu0
    %v212 = vadd.f32 %v59, %v211
    %213 = vdwg.mxu0
    %214 = vmatpush.msra.mxu0 0.0
    %215 = vmatpush.msra.mxu0 0.0
    %216 = vmatpush.msra.mxu0 0.0
    %217 = vmatpush.msra.mxu0 0.0
    %218 = vmatpush.msra.mxu0 0.0
    %219 = vmatpush.msra.mxu0 0.0
    %220 = vmatpush.msra.mxu0 0.0
    %221 = vmatpush.msra.mxu0 0.0
    %222 = vmatpush.msra.mxu0 0.0
    %223 = vmatpush.msra.mxu0 0.0
    %224 = vmatpush.msra.mxu0 0.0
    %225 = vmatpush.msra.mxu0 0.0
    %226 = vmatpush.msra.mxu0 0.0
    %227 = vmatpush.msra.mxu0 0.0
    %228 = vmatpush.msra.mxu0 0.0
    %229 = vmatpush.msra.mxu0 %v99
    %230 = vmatmul.f32.gmra.mxu0 %v83
    %v231 = vpop.f32.mrf.mxu0
    %232 = vmatmul.f32.gmra.mxu0 %v86
    %v233 = vpop.f32.mrf.mxu0
    %v234 = vadd.f32 %v60, %v233
    %235 = vdwg.mxu0
    %v236 = vld [vmem:[%s3 + $0x9] sm:$0x1]
    %v238 = vperm.slane %v236, 0
    %v240 = vld [vmem:[%s3 + $0xa] sm:$0x1]
    %v242 = vperm.slane %v240, 0
    %v244 = vld [vmem:[%s3 + $0x6] sm:$0x7]
    %v246 = vperm.slane %v244, 0
    %v247 = vperm.slane %v244, 1
    %v248 = vperm.slane %v244, 2
    %v252 = vld [vmem:[#allocation6] sm:$0xff]
    %v253 = vld [vmem:[#allocation6 + $0x8] sm:$0xff]
    %v254 = vld [vmem:[#allocation6 + $0x10] sm:$0xff]
    %v255 = vld [vmem:[#allocation6 + $0x50] sm:$0xff]
    %v256 = vld [vmem:[#allocation6 + $0x58] sm:$0xff]
    %v257 = vld [vmem:[#allocation6 + $0x60] sm:$0xff]
    %v258 = vld [vmem:[#allocation6 + $0xa0] sm:$0xff]
    %v259 = vld [vmem:[#allocation6 + $0xa8] sm:$0xff]
    %v260 = vld [vmem:[#allocation6 + $0xb0] sm:$0xff]
    %v261 = vld [vmem:[#allocation6 + $0xf0] sm:$0xff]
    %v262 = vld [vmem:[#allocation6 + $0xf8] sm:$0xff]
    %v263 = vld [vmem:[#allocation6 + $0x100] sm:$0xff]
    %v264 = vld [vmem:[#allocation6 + $0x140] sm:$0xff]
    %v265 = vld [vmem:[#allocation6 + $0x148] sm:$0xff]
    %v266 = vld [vmem:[#allocation6 + $0x150] sm:$0xff]
    %v267 = vld [vmem:[#allocation6 + $0x190] sm:$0xff]
    %v268 = vld [vmem:[#allocation6 + $0x198] sm:$0xff]
    %v269 = vld [vmem:[#allocation6 + $0x1a0] sm:$0xff]
    %v270 = vld [vmem:[#allocation6 + $0x1e0] sm:$0xff]
    %v271 = vld [vmem:[#allocation6 + $0x1e8] sm:$0xff]
    %v272 = vld [vmem:[#allocation6 + $0x1f0] sm:$0xff]
    %v273 = vld [vmem:[#allocation6 + $0x230] sm:$0xff]
    %v274 = vld [vmem:[#allocation6 + $0x238] sm:$0xff]
    %v275 = vld [vmem:[#allocation6 + $0x240] sm:$0xff]
    %v276 = vld [vmem:[#allocation6 + $0x280] sm:$0xff]
    %v277 = vld [vmem:[#allocation6 + $0x288] sm:$0xff]
    %v278 = vld [vmem:[#allocation6 + $0x290] sm:$0xff]
    %v279 = vld [vmem:[#allocation6 + $0x2d0] sm:$0xff]
    %v280 = vld [vmem:[#allocation6 + $0x2d8] sm:$0xff]
    %v281 = vld [vmem:[#allocation6 + $0x2e0] sm:$0xff]
    %v282 = vld [vmem:[#allocation6 + $0x320] sm:$0xff]
    %v283 = vld [vmem:[#allocation6 + $0x328] sm:$0xff]
    %v284 = vld [vmem:[#allocation6 + $0x330] sm:$0xff]
    %v285 = vld [vmem:[#allocation6 + $0x370] sm:$0xff]
    %v286 = vld [vmem:[#allocation6 + $0x378] sm:$0xff]
    %v287 = vld [vmem:[#allocation6 + $0x380] sm:$0xff]
    %v288 = vld [vmem:[#allocation6 + $0x3c0] sm:$0xff]
    %v289 = vld [vmem:[#allocation6 + $0x3c8] sm:$0xff]
    %v290 = vld [vmem:[#allocation6 + $0x3d0] sm:$0xff]
    %v291 = vld [vmem:[#allocation6 + $0x410] sm:$0xff]
    %v292 = vld [vmem:[#allocation6 + $0x418] sm:$0xff]
    %v293 = vld [vmem:[#allocation6 + $0x420] sm:$0xff]
    %v294 = vld [vmem:[#allocation6 + $0x460] sm:$0xff]
    %v295 = vld [vmem:[#allocation6 + $0x468] sm:$0xff]
    %v296 = vld [vmem:[#allocation6 + $0x470] sm:$0xff]
    %v297 = vld [vmem:[#allocation6 + $0x4b0] sm:$0xff]
    %v298 = vld [vmem:[#allocation6 + $0x4b8] sm:$0xff]
    %v299 = vld [vmem:[#allocation6 + $0x4c0] sm:$0xff]
    %300 = vmatpush.msra.mxu0 %v297
    %301 = vmatpush.msra.mxu0 %v294
    %302 = vmatpush.msra.mxu0 %v291
    %303 = vmatpush.msra.mxu0 %v288
    %304 = vmatpush.msra.mxu0 %v285
    %305 = vmatpush.msra.mxu0 %v282
    %306 = vmatpush.msra.mxu0 %v279
    %307 = vmatpush.msra.mxu0 %v276
    %308 = vmatpush.msra.mxu0 %v273
    %309 = vmatpush.msra.mxu0 %v270
    %310 = vmatpush.msra.mxu0 %v267
    %311 = vmatpush.msra.mxu0 %v264
    %312 = vmatpush.msra.mxu0 %v261
    %313 = vmatpush.msra.mxu0 %v258
    %314 = vmatpush.msra.mxu0 %v255
    %315 = vmatpush.msra.mxu0 %v252
    %316 = vmatmul.f32.gmra.mxu0 0.0
    %v317 = vpop.f32.mrf.mxu0
    %v318 = vadd.f32 0.0, %v317
    %319 = vdwg.mxu0
    %320 = vmatpush.msra.mxu0 %v298
    %321 = vmatpush.msra.mxu0 %v295
    %322 = vmatpush.msra.mxu0 %v292
    %323 = vmatpush.msra.mxu0 %v289
    %324 = vmatpush.msra.mxu0 %v286
    %325 = vmatpush.msra.mxu0 %v283
    %326 = vmatpush.msra.mxu0 %v280
    %327 = vmatpush.msra.mxu0 %v277
    %328 = vmatpush.msra.mxu0 %v274
    %329 = vmatpush.msra.mxu0 %v271
    %330 = vmatpush.msra.mxu0 %v268
    %331 = vmatpush.msra.mxu0 %v265
    %332 = vmatpush.msra.mxu0 %v262
    %333 = vmatpush.msra.mxu0 %v259
    %334 = vmatpush.msra.mxu0 %v256
    %335 = vmatpush.msra.mxu0 %v253
    %336 = vmatmul.f32.gmra.mxu0 0.0
    %v337 = vpop.f32.mrf.mxu0
    %v338 = vadd.f32 0.0, %v337
    %339 = vdwg.mxu0
    %340 = vmatpush.msra.mxu0 %v299
    %341 = vmatpush.msra.mxu0 %v296
    %342 = vmatpush.msra.mxu0 %v293
    %343 = vmatpush.msra.mxu0 %v290
    %344 = vmatpush.msra.mxu0 %v287
    %345 = vmatpush.msra.mxu0 %v284
    %346 = vmatpush.msra.mxu0 %v281
    %347 = vmatpush.msra.mxu0 %v278
    %348 = vmatpush.msra.mxu0 %v275
    %349 = vmatpush.msra.mxu0 %v272
    %350 = vmatpush.msra.mxu0 %v269
    %351 = vmatpush.msra.mxu0 %v266
    %352 = vmatpush.msra.mxu0 %v263
    %353 = vmatpush.msra.mxu0 %v260
    %354 = vmatpush.msra.mxu0 %v257
    %355 = vmatpush.msra.mxu0 %v254
    %356 = vmatmul.f32.gmra.mxu0 0.0
    %v357 = vpop.f32.mrf.mxu0
    %v358 = vadd.f32 0.0, %v357
    %359 = vdwg.mxu0
    %v360 = vadd.f32 %v119, %v318
    %v361 = vxor.u32 %v360, 2147483648
    %v362 = vmul.f32 %v361, 1.442695
    %v363 = vpow.pop %v362
    %v364 = vadd.f32 %v363, 1.0
    %v365 = vrcp.pop %v364
    %v366 = vmul.f32 %v364, %v365
    %v367 = vsub.f32 1.0, %v366
    %v368 = vmul.f32 %v365, %v367
    %v369 = vadd.f32 %v365, %v368
    %vm370 = vweird.f32 %v364
    %vm371 = vweird.f32 %v365
    %vm372 = vmor %vm370, %vm371
    %v373 = vsel %vm372, %v365, %v369
    %v374 = vand.u32 2147483647, %v364
    %vm375 = vcmp.eq.f32.partialorder %v374, 8.507059e+37
    %v376 = vand.u32 %v364, 2147483648
    %v377 = vor.u32 1.1754944e-38, %v376
    %v378 = vsel %vm375, %v377, %v373
    %v379 = vmul.f32 1.0, %v378
    %v380 = vadd.f32 %v142, %v338
    %v381 = vxor.u32 %v380, 2147483648
    %v382 = vmul.f32 %v381, 1.442695
    %v383 = vpow.pop %v382
    %v384 = vadd.f32 %v383, 1.0
    %v385 = vrcp.pop %v384
    %v386 = vmul.f32 %v384, %v385
    %v387 = vsub.f32 1.0, %v386
    %v388 = vmul.f32 %v385, %v387
    %v389 = vadd.f32 %v385, %v388
    %vm390 = vweird.f32 %v384
    %vm391 = vweird.f32 %v385
    %vm392 = vmor %vm390, %vm391
    %v393 = vsel %vm392, %v385, %v389
    %v394 = vand.u32 2147483647, %v384
    %vm395 = vcmp.eq.f32.partialorder %v394, 8.507059e+37
    %v396 = vand.u32 %v384, 2147483648
    %v397 = vor.u32 1.1754944e-38, %v396
    %v398 = vsel %vm395, %v397, %v393
    %v399 = vmul.f32 1.0, %v398
    %v400 = vadd.f32 %v358, %v238
    %v401 = vmul.f32 %v379, %v400
    %v402 = vadd.f32 %v165, %v401
    %v403 = vtanh.pop %v402
    %v404 = vsub.f32 1.0, %v399
    %v405 = vmul.f32 %v404, %v403
    %v406 = vmul.f32 %v399, 0.0
    %v407 = vadd.f32 %v405, %v406
    %408 = vmatpush.msra.mxu0 %v297
    %409 = vmatpush.msra.mxu0 %v294
    %410 = vmatpush.msra.mxu0 %v291
    %411 = vmatpush.msra.mxu0 %v288
    %412 = vmatpush.msra.mxu0 %v285
    %413 = vmatpush.msra.mxu0 %v282
    %414 = vmatpush.msra.mxu0 %v279
    %415 = vmatpush.msra.mxu0 %v276
    %416 = vmatpush.msra.mxu0 %v273
    %417 = vmatpush.msra.mxu0 %v270
    %418 = vmatpush.msra.mxu0 %v267
    %419 = vmatpush.msra.mxu0 %v264
    %420 = vmatpush.msra.mxu0 %v261
    %421 = vmatpush.msra.mxu0 %v258
    %422 = vmatpush.msra.mxu0 %v255
    %423 = vmatpush.msra.mxu0 %v252
    %424 = vmatmul.f32.gmra.mxu0 %v407
    %v425 = vpop.f32.mrf.mxu0
    %v426 = vadd.f32 0.0, %v425
    %427 = vdwg.mxu0
    %428 = vmatpush.msra.mxu0 %v298
    %429 = vmatpush.msra.mxu0 %v295
    %430 = vmatpush.msra.mxu0 %v292
    %431 = vmatpush.msra.mxu0 %v289
    %432 = vmatpush.msra.mxu0 %v286
    %433 = vmatpush.msra.mxu0 %v283
    %434 = vmatpush.msra.mxu0 %v280
    %435 = vmatpush.msra.mxu0 %v277
    %436 = vmatpush.msra.mxu0 %v274
    %437 = vmatpush.msra.mxu0 %v271
    %438 = vmatpush.msra.mxu0 %v268
    %439 = vmatpush.msra.mxu0 %v265
    %440 = vmatpush.msra.mxu0 %v262
    %441 = vmatpush.msra.mxu0 %v259
    %442 = vmatpush.msra.mxu0 %v256
    %443 = vmatpush.msra.mxu0 %v253
    %444 = vmatmul.f32.gmra.mxu0 %v407
    %v445 = vpop.f32.mrf.mxu0
    %v446 = vadd.f32 0.0, %v445
    %447 = vdwg.mxu0
    %448 = vmatpush.msra.mxu0 %v299
    %449 = vmatpush.msra.mxu0 %v296
    %450 = vmatpush.msra.mxu0 %v293
    %451 = vmatpush.msra.mxu0 %v290
    %452 = vmatpush.msra.mxu0 %v287
    %453 = vmatpush.msra.mxu0 %v284
    %454 = vmatpush.msra.mxu0 %v281
    %455 = vmatpush.msra.mxu0 %v278
    %456 = vmatpush.msra.mxu0 %v275
    %457 = vmatpush.msra.mxu0 %v272
    %458 = vmatpush.msra.mxu0 %v269
    %459 = vmatpush.msra.mxu0 %v266
    %460 = vmatpush.msra.mxu0 %v263
    %461 = vmatpush.msra.mxu0 %v260
    %462 = vmatpush.msra.mxu0 %v257
    %463 = vmatpush.msra.mxu0 %v254
    %464 = vmatmul.f32.gmra.mxu0 %v407
    %v465 = vpop.f32.mrf.mxu0
    %v466 = vadd.f32 0.0, %v465
    %467 = vdwg.mxu0
    %v469 = vrot.slane %v426, 6
    %v471 = vadd.f32 %v119, %v469
    %v472 = vxor.u32 %v471, 2147483648
    %v473 = vmul.f32 %v472, 1.442695
    %v474 = vpow.pop %v473
    %v475 = vadd.f32 %v474, 1.0
    %v476 = vrcp.pop %v475
    %v477 = vmul.f32 %v475, %v476
    %v478 = vsub.f32 1.0, %v477
    %v479 = vmul.f32 %v476, %v478
    %v480 = vadd.f32 %v476, %v479
    %vm481 = vweird.f32 %v475
    %vm482 = vweird.f32 %v476
    %vm483 = vmor %vm481, %vm482
    %v484 = vsel %vm483, %v476, %v480
    %v485 = vand.u32 2147483647, %v475
    %vm486 = vcmp.eq.f32.partialorder %v485, 8.507059e+37
    %v487 = vand.u32 %v475, 2147483648
    %v488 = vor.u32 1.1754944e-38, %v487
    %v489 = vsel %vm486, %v488, %v484
    %v490 = vmul.f32 1.0, %v489
    %v492 = vrot.slane %v446, 6
    %v494 = vadd.f32 %v142, %v492
    %v495 = vxor.u32 %v494, 2147483648
    %v496 = vmul.f32 %v495, 1.442695
    %v497 = vpow.pop %v496
    %v498 = vadd.f32 %v497, 1.0
    %v499 = vrcp.pop %v498
    %v500 = vmul.f32 %v498, %v499
    %v501 = vsub.f32 1.0, %v500
    %v502 = vmul.f32 %v499, %v501
    %v503 = vadd.f32 %v499, %v502
    %vm504 = vweird.f32 %v498
    %vm505 = vweird.f32 %v499
    %vm506 = vmor %vm504, %vm505
    %v507 = vsel %vm506, %v499, %v503
    %v508 = vand.u32 2147483647, %v498
    %vm509 = vcmp.eq.f32.partialorder %v508, 8.507059e+37
    %v510 = vand.u32 %v498, 2147483648
    %v511 = vor.u32 1.1754944e-38, %v510
    %v512 = vsel %vm509, %v511, %v507
    %v513 = vmul.f32 1.0, %v512
    %v514 = vadd.f32 %v466, %v238
    %v516 = vrot.slane %v514, 6
    %v518 = vmul.f32 %v490, %v516
    %v519 = vadd.f32 %v165, %v518
    %v520 = vtanh.pop %v519
    %v521 = vsub.f32 1.0, %v513
    %v522 = vmul.f32 %v521, %v520
    %v524 = vrot.slane %v407, 6
    %v526 = vmul.f32 %v513, %v524
    %v527 = vadd.f32 %v522, %v526
    %v529 = vrot.slane %v527, 2
    %531 = vmatpush.msra.mxu0 %v297
    %532 = vmatpush.msra.mxu0 %v294
    %533 = vmatpush.msra.mxu0 %v291
    %534 = vmatpush.msra.mxu0 %v288
    %535 = vmatpush.msra.mxu0 %v285
    %536 = vmatpush.msra.mxu0 %v282
    %537 = vmatpush.msra.mxu0 %v279
    %538 = vmatpush.msra.mxu0 %v276
    %539 = vmatpush.msra.mxu0 %v273
    %540 = vmatpush.msra.mxu0 %v270
    %541 = vmatpush.msra.mxu0 %v267
    %542 = vmatpush.msra.mxu0 %v264
    %543 = vmatpush.msra.mxu0 %v261
    %544 = vmatpush.msra.mxu0 %v258
    %545 = vmatpush.msra.mxu0 %v255
    %546 = vmatpush.msra.mxu0 %v252
    %547 = vmatmul.f32.gmra.mxu0 %v529
    %v548 = vpop.f32.mrf.mxu0
    %v549 = vadd.f32 0.0, %v548
    %550 = vdwg.mxu0
    %551 = vmatpush.msra.mxu0 %v298
    %552 = vmatpush.msra.mxu0 %v295
    %553 = vmatpush.msra.mxu0 %v292
    %554 = vmatpush.msra.mxu0 %v289
    %555 = vmatpush.msra.mxu0 %v286
    %556 = vmatpush.msra.mxu0 %v283
    %557 = vmatpush.msra.mxu0 %v280
    %558 = vmatpush.msra.mxu0 %v277
    %559 = vmatpush.msra.mxu0 %v274
    %560 = vmatpush.msra.mxu0 %v271
    %561 = vmatpush.msra.mxu0 %v268
    %562 = vmatpush.msra.mxu0 %v265
    %563 = vmatpush.msra.mxu0 %v262
    %564 = vmatpush.msra.mxu0 %v259
    %565 = vmatpush.msra.mxu0 %v256
    %566 = vmatpush.msra.mxu0 %v253
    %567 = vmatmul.f32.gmra.mxu0 %v529
    %v568 = vpop.f32.mrf.mxu0
    %v569 = vadd.f32 0.0, %v568
    %570 = vdwg.mxu0
    %571 = vmatpush.msra.mxu0 %v299
    %572 = vmatpush.msra.mxu0 %v296
    %573 = vmatpush.msra.mxu0 %v293
    %574 = vmatpush.msra.mxu0 %v290
    %575 = vmatpush.msra.mxu0 %v287
    %576 = vmatpush.msra.mxu0 %v284
    %577 = vmatpush.msra.mxu0 %v281
    %578 = vmatpush.msra.mxu0 %v278
    %579 = vmatpush.msra.mxu0 %v275
    %580 = vmatpush.msra.mxu0 %v272
    %581 = vmatpush.msra.mxu0 %v269
    %582 = vmatpush.msra.mxu0 %v266
    %583 = vmatpush.msra.mxu0 %v263
    %584 = vmatpush.msra.mxu0 %v260
    %585 = vmatpush.msra.mxu0 %v257
    %586 = vmatpush.msra.mxu0 %v254
    %587 = vmatmul.f32.gmra.mxu0 %v529
    %v588 = vpop.f32.mrf.mxu0
    %v589 = vadd.f32 0.0, %v588
    %590 = vdwg.mxu0
    %v592 = vrot.slane %v549, 4
    %v594 = vadd.f32 %v119, %v592
    %v595 = vxor.u32 %v594, 2147483648
    %v596 = vmul.f32 %v595, 1.442695
    %v597 = vpow.pop %v596
    %v598 = vadd.f32 %v597, 1.0
    %v599 = vrcp.pop %v598
    %v600 = vmul.f32 %v598, %v599
    %v601 = vsub.f32 1.0, %v600
    %v602 = vmul.f32 %v599, %v601
    %v603 = vadd.f32 %v599, %v602
    %vm604 = vweird.f32 %v598
    %vm605 = vweird.f32 %v599
    %vm606 = vmor %vm604, %vm605
    %v607 = vsel %vm606, %v599, %v603
    %v608 = vand.u32 2147483647, %v598
    %vm609 = vcmp.eq.f32.partialorder %v608, 8.507059e+37
    %v610 = vand.u32 %v598, 2147483648
    %v611 = vor.u32 1.1754944e-38, %v610
    %v612 = vsel %vm609, %v611, %v607
    %v613 = vmul.f32 1.0, %v612
    %v615 = vrot.slane %v569, 4
    %v617 = vadd.f32 %v142, %v615
    %v618 = vxor.u32 %v617, 2147483648
    %v619 = vmul.f32 %v618, 1.442695
    %v620 = vpow.pop %v619
    %v621 = vadd.f32 %v620, 1.0
    %v622 = vrcp.pop %v621
    %v623 = vmul.f32 %v621, %v622
    %v624 = vsub.f32 1.0, %v623
    %v625 = vmul.f32 %v622, %v624
    %v626 = vadd.f32 %v622, %v625
    %vm627 = vweird.f32 %v621
    %vm628 = vweird.f32 %v622
    %vm629 = vmor %vm627, %vm628
    %v630 = vsel %vm629, %v622, %v626
    %v631 = vand.u32 2147483647, %v621
    %vm632 = vcmp.eq.f32.partialorder %v631, 8.507059e+37
    %v633 = vand.u32 %v621, 2147483648
    %v634 = vor.u32 1.1754944e-38, %v633
    %v635 = vsel %vm632, %v634, %v630
    %v636 = vmul.f32 1.0, %v635
    %v637 = vadd.f32 %v589, %v238
    %v639 = vrot.slane %v637, 4
    %v641 = vmul.f32 %v613, %v639
    %v642 = vadd.f32 %v165, %v641
    %v643 = vtanh.pop %v642
    %v644 = vsub.f32 1.0, %v636
    %v645 = vmul.f32 %v644, %v643
    %v646 = vrot.slane %v527, 6
    %v648 = vmul.f32 %v636, %v646
    %v649 = vadd.f32 %v645, %v648
    %v651 = vrot.slane %v649, 4
    %653 = vmatpush.msra.mxu0 %v297
    %654 = vmatpush.msra.mxu0 %v294
    %655 = vmatpush.msra.mxu0 %v291
    %656 = vmatpush.msra.mxu0 %v288
    %657 = vmatpush.msra.mxu0 %v285
    %658 = vmatpush.msra.mxu0 %v282
    %659 = vmatpush.msra.mxu0 %v279
    %660 = vmatpush.msra.mxu0 %v276
    %661 = vmatpush.msra.mxu0 %v273
    %662 = vmatpush.msra.mxu0 %v270
    %663 = vmatpush.msra.mxu0 %v267
    %664 = vmatpush.msra.mxu0 %v264
    %665 = vmatpush.msra.mxu0 %v261
    %666 = vmatpush.msra.mxu0 %v258
    %667 = vmatpush.msra.mxu0 %v255
    %668 = vmatpush.msra.mxu0 %v252
    %669 = vmatmul.f32.gmra.mxu0 %v651
    %v670 = vpop.f32.mrf.mxu0
    %v671 = vadd.f32 0.0, %v670
    %672 = vdwg.mxu0
    %673 = vmatpush.msra.mxu0 %v298
    %674 = vmatpush.msra.mxu0 %v295
    %675 = vmatpush.msra.mxu0 %v292
    %676 = vmatpush.msra.mxu0 %v289
    %677 = vmatpush.msra.mxu0 %v286
    %678 = vmatpush.msra.mxu0 %v283
    %679 = vmatpush.msra.mxu0 %v280
    %680 = vmatpush.msra.mxu0 %v277
    %681 = vmatpush.msra.mxu0 %v274
    %682 = vmatpush.msra.mxu0 %v271
    %683 = vmatpush.msra.mxu0 %v268
    %684 = vmatpush.msra.mxu0 %v265
    %685 = vmatpush.msra.mxu0 %v262
    %686 = vmatpush.msra.mxu0 %v259
    %687 = vmatpush.msra.mxu0 %v256
    %688 = vmatpush.msra.mxu0 %v253
    %689 = vmatmul.f32.gmra.mxu0 %v651
    %v690 = vpop.f32.mrf.mxu0
    %v691 = vadd.f32 0.0, %v690
    %692 = vdwg.mxu0
    %693 = vmatpush.msra.mxu0 %v299
    %694 = vmatpush.msra.mxu0 %v296
    %695 = vmatpush.msra.mxu0 %v293
    %696 = vmatpush.msra.mxu0 %v290
    %697 = vmatpush.msra.mxu0 %v287
    %698 = vmatpush.msra.mxu0 %v284
    %699 = vmatpush.msra.mxu0 %v281
    %700 = vmatpush.msra.mxu0 %v278
    %701 = vmatpush.msra.mxu0 %v275
    %702 = vmatpush.msra.mxu0 %v272
    %703 = vmatpush.msra.mxu0 %v269
    %704 = vmatpush.msra.mxu0 %v266
    %705 = vmatpush.msra.mxu0 %v263
    %706 = vmatpush.msra.mxu0 %v260
    %707 = vmatpush.msra.mxu0 %v257
    %708 = vmatpush.msra.mxu0 %v254
    %709 = vmatmul.f32.gmra.mxu0 %v651
    %v710 = vpop.f32.mrf.mxu0
    %v711 = vadd.f32 0.0, %v710
    %712 = vdwg.mxu0
    %v714 = vrot.slane %v671, 2
    %v716 = vadd.f32 %v119, %v714
    %v717 = vxor.u32 %v716, 2147483648
    %v718 = vmul.f32 %v717, 1.442695
    %v719 = vpow.pop %v718
    %v720 = vadd.f32 %v719, 1.0
    %v721 = vrcp.pop %v720
    %v722 = vmul.f32 %v720, %v721
    %v723 = vsub.f32 1.0, %v722
    %v724 = vmul.f32 %v721, %v723
    %v725 = vadd.f32 %v721, %v724
    %vm726 = vweird.f32 %v720
    %vm727 = vweird.f32 %v721
    %vm728 = vmor %vm726, %vm727
    %v729 = vsel %vm728, %v721, %v725
    %v730 = vand.u32 2147483647, %v720
    %vm731 = vcmp.eq.f32.partialorder %v730, 8.507059e+37
    %v732 = vand.u32 %v720, 2147483648
    %v733 = vor.u32 1.1754944e-38, %v732
    %v734 = vsel %vm731, %v733, %v729
    %v735 = vmul.f32 1.0, %v734
    %v737 = vrot.slane %v691, 2
    %v739 = vadd.f32 %v142, %v737
    %v740 = vxor.u32 %v739, 2147483648
    %v741 = vmul.f32 %v740, 1.442695
    %v742 = vpow.pop %v741
    %v743 = vadd.f32 %v742, 1.0
    %v744 = vrcp.pop %v743
    %v745 = vmul.f32 %v743, %v744
    %v746 = vsub.f32 1.0, %v745
    %v747 = vmul.f32 %v744, %v746
    %v748 = vadd.f32 %v744, %v747
    %vm749 = vweird.f32 %v743
    %vm750 = vweird.f32 %v744
    %vm751 = vmor %vm749, %vm750
    %v752 = vsel %vm751, %v744, %v748
    %v753 = vand.u32 2147483647, %v743
    %vm754 = vcmp.eq.f32.partialorder %v753, 8.507059e+37
    %v755 = vand.u32 %v743, 2147483648
    %v756 = vor.u32 1.1754944e-38, %v755
    %v757 = vsel %vm754, %v756, %v752
    %v758 = vmul.f32 1.0, %v757
    %v759 = vadd.f32 %v711, %v238
    %v761 = vrot.slane %v759, 2
    %v763 = vmul.f32 %v735, %v761
    %v764 = vadd.f32 %v165, %v763
    %v765 = vtanh.pop %v764
    %v766 = vsub.f32 1.0, %v758
    %v767 = vmul.f32 %v766, %v765
    %v768 = vrot.slane %v649, 6
    %v770 = vmul.f32 %v758, %v768
    %v771 = vadd.f32 %v767, %v770
    %v773 = vrot.slane %v771, 6
    %775 = vmatpush.msra.mxu0 %v297
    %776 = vmatpush.msra.mxu0 %v294
    %777 = vmatpush.msra.mxu0 %v291
    %778 = vmatpush.msra.mxu0 %v288
    %779 = vmatpush.msra.mxu0 %v285
    %780 = vmatpush.msra.mxu0 %v282
    %781 = vmatpush.msra.mxu0 %v279
    %782 = vmatpush.msra.mxu0 %v276
    %783 = vmatpush.msra.mxu0 %v273
    %784 = vmatpush.msra.mxu0 %v270
    %785 = vmatpush.msra.mxu0 %v267
    %786 = vmatpush.msra.mxu0 %v264
    %787 = vmatpush.msra.mxu0 %v261
    %788 = vmatpush.msra.mxu0 %v258
    %789 = vmatpush.msra.mxu0 %v255
    %790 = vmatpush.msra.mxu0 %v252
    %791 = vmatmul.f32.gmra.mxu0 %v773
    %v792 = vpop.f32.mrf.mxu0
    %v793 = vadd.f32 0.0, %v792
    %794 = vdwg.mxu0
    %795 = vmatpush.msra.mxu0 %v298
    %796 = vmatpush.msra.mxu0 %v295
    %797 = vmatpush.msra.mxu0 %v292
    %798 = vmatpush.msra.mxu0 %v289
    %799 = vmatpush.msra.mxu0 %v286
    %800 = vmatpush.msra.mxu0 %v283
    %801 = vmatpush.msra.mxu0 %v280
    %802 = vmatpush.msra.mxu0 %v277
    %803 = vmatpush.msra.mxu0 %v274
    %804 = vmatpush.msra.mxu0 %v271
    %805 = vmatpush.msra.mxu0 %v268
    %806 = vmatpush.msra.mxu0 %v265
    %807 = vmatpush.msra.mxu0 %v262
    %808 = vmatpush.msra.mxu0 %v259
    %809 = vmatpush.msra.mxu0 %v256
    %810 = vmatpush.msra.mxu0 %v253
    %811 = vmatmul.f32.gmra.mxu0 %v773
    %v812 = vpop.f32.mrf.mxu0
    %v813 = vadd.f32 0.0, %v812
    %814 = vdwg.mxu0
    %815 = vmatpush.msra.mxu0 %v299
    %816 = vmatpush.msra.mxu0 %v296
    %817 = vmatpush.msra.mxu0 %v293
    %818 = vmatpush.msra.mxu0 %v290
    %819 = vmatpush.msra.mxu0 %v287
    %820 = vmatpush.msra.mxu0 %v284
    %821 = vmatpush.msra.mxu0 %v281
    %822 = vmatpush.msra.mxu0 %v278
    %823 = vmatpush.msra.mxu0 %v275
    %824 = vmatpush.msra.mxu0 %v272
    %825 = vmatpush.msra.mxu0 %v269
    %826 = vmatpush.msra.mxu0 %v266
    %827 = vmatpush.msra.mxu0 %v263
    %828 = vmatpush.msra.mxu0 %v260
    %829 = vmatpush.msra.mxu0 %v257
    %830 = vmatpush.msra.mxu0 %v254
    %831 = vmatmul.f32.gmra.mxu0 %v773
    %v832 = vpop.f32.mrf.mxu0
    %v833 = vadd.f32 0.0, %v832
    %834 = vdwg.mxu0
    %v835 = vadd.f32 %v122, %v793
    %v836 = vxor.u32 %v835, 2147483648
    %v837 = vmul.f32 %v836, 1.442695
    %v838 = vpow.pop %v837
    %v839 = vadd.f32 %v838, 1.0
    %v840 = vrcp.pop %v839
    %v841 = vmul.f32 %v839, %v840
    %v842 = vsub.f32 1.0, %v841
    %v843 = vmul.f32 %v840, %v842
    %v844 = vadd.f32 %v840, %v843
    %vm845 = vweird.f32 %v839
    %vm846 = vweird.f32 %v840
    %vm847 = vmor %vm845, %vm846
    %v848 = vsel %vm847, %v840, %v844
    %v849 = vand.u32 2147483647, %v839
    %vm850 = vcmp.eq.f32.partialorder %v849, 8.507059e+37
    %v851 = vand.u32 %v839, 2147483648
    %v852 = vor.u32 1.1754944e-38, %v851
    %v853 = vsel %vm850, %v852, %v848
    %v854 = vmul.f32 1.0, %v853
    %v855 = vadd.f32 %v145, %v813
    %v856 = vxor.u32 %v855, 2147483648
    %v857 = vmul.f32 %v856, 1.442695
    %v858 = vpow.pop %v857
    %v859 = vadd.f32 %v858, 1.0
    %v860 = vrcp.pop %v859
    %v861 = vmul.f32 %v859, %v860
    %v862 = vsub.f32 1.0, %v861
    %v863 = vmul.f32 %v860, %v862
    %v864 = vadd.f32 %v860, %v863
    %vm865 = vweird.f32 %v859
    %vm866 = vweird.f32 %v860
    %vm867 = vmor %vm865, %vm866
    %v868 = vsel %vm867, %v860, %v864
    %v869 = vand.u32 2147483647, %v859
    %vm870 = vcmp.eq.f32.partialorder %v869, 8.507059e+37
    %v871 = vand.u32 %v859, 2147483648
    %v872 = vor.u32 1.1754944e-38, %v871
    %v873 = vsel %vm870, %v872, %v868
    %v874 = vmul.f32 1.0, %v873
    %v875 = vadd.f32 %v833, %v238
    %v876 = vmul.f32 %v854, %v875
    %v877 = vadd.f32 %v168, %v876
    %v878 = vtanh.pop %v877
    %v879 = vsub.f32 1.0, %v874
    %v880 = vmul.f32 %v879, %v878
    %v881 = vmul.f32 %v874, %v773
    %v882 = vadd.f32 %v880, %v881
    %883 = vmatpush.msra.mxu0 %v297
    %884 = vmatpush.msra.mxu0 %v294
    %885 = vmatpush.msra.mxu0 %v291
    %886 = vmatpush.msra.mxu0 %v288
    %887 = vmatpush.msra.mxu0 %v285
    %888 = vmatpush.msra.mxu0 %v282
    %889 = vmatpush.msra.mxu0 %v279
    %890 = vmatpush.msra.mxu0 %v276
    %891 = vmatpush.msra.mxu0 %v273
    %892 = vmatpush.msra.mxu0 %v270
    %893 = vmatpush.msra.mxu0 %v267
    %894 = vmatpush.msra.mxu0 %v264
    %895 = vmatpush.msra.mxu0 %v261
    %896 = vmatpush.msra.mxu0 %v258
    %897 = vmatpush.msra.mxu0 %v255
    %898 = vmatpush.msra.mxu0 %v252
    %899 = vmatmul.f32.gmra.mxu0 %v882
    %v900 = vpop.f32.mrf.mxu0
    %v901 = vadd.f32 0.0, %v900
    %902 = vdwg.mxu0
    %903 = vmatpush.msra.mxu0 %v298
    %904 = vmatpush.msra.mxu0 %v295
    %905 = vmatpush.msra.mxu0 %v292
    %906 = vmatpush.msra.mxu0 %v289
    %907 = vmatpush.msra.mxu0 %v286
    %908 = vmatpush.msra.mxu0 %v283
    %909 = vmatpush.msra.mxu0 %v280
    %910 = vmatpush.msra.mxu0 %v277
    %911 = vmatpush.msra.mxu0 %v274
    %912 = vmatpush.msra.mxu0 %v271
    %913 = vmatpush.msra.mxu0 %v268
    %914 = vmatpush.msra.mxu0 %v265
    %915 = vmatpush.msra.mxu0 %v262
    %916 = vmatpush.msra.mxu0 %v259
    %917 = vmatpush.msra.mxu0 %v256
    %918 = vmatpush.msra.mxu0 %v253
    %919 = vmatmul.f32.gmra.mxu0 %v882
    %v920 = vpop.f32.mrf.mxu0
    %v921 = vadd.f32 0.0, %v920
    %922 = vdwg.mxu0
    %923 = vmatpush.msra.mxu0 %v299
    %924 = vmatpush.msra.mxu0 %v296
    %925 = vmatpush.msra.mxu0 %v293
    %926 = vmatpush.msra.mxu0 %v290
    %927 = vmatpush.msra.mxu0 %v287
    %928 = vmatpush.msra.mxu0 %v284
    %929 = vmatpush.msra.mxu0 %v281
    %930 = vmatpush.msra.mxu0 %v278
    %931 = vmatpush.msra.mxu0 %v275
    %932 = vmatpush.msra.mxu0 %v272
    %933 = vmatpush.msra.mxu0 %v269
    %934 = vmatpush.msra.mxu0 %v266
    %935 = vmatpush.msra.mxu0 %v263
    %936 = vmatpush.msra.mxu0 %v260
    %937 = vmatpush.msra.mxu0 %v257
    %938 = vmatpush.msra.mxu0 %v254
    %939 = vmatmul.f32.gmra.mxu0 %v882
    %v940 = vpop.f32.mrf.mxu0
    %v941 = vadd.f32 0.0, %v940
    %942 = vdwg.mxu0
    %v944 = vrot.slane %v901, 6
    %v946 = vadd.f32 %v122, %v944
    %v947 = vxor.u32 %v946, 2147483648
    %v948 = vmul.f32 %v947, 1.442695
    %v949 = vpow.pop %v948
    %v950 = vadd.f32 %v949, 1.0
    %v951 = vrcp.pop %v950
    %v952 = vmul.f32 %v950, %v951
    %v953 = vsub.f32 1.0, %v952
    %v954 = vmul.f32 %v951, %v953
    %v955 = vadd.f32 %v951, %v954
    %vm956 = vweird.f32 %v950
    %vm957 = vweird.f32 %v951
    %vm958 = vmor %vm956, %vm957
    %v959 = vsel %vm958, %v951, %v955
    %v960 = vand.u32 2147483647, %v950
    %vm961 = vcmp.eq.f32.partialorder %v960, 8.507059e+37
    %v962 = vand.u32 %v950, 2147483648
    %v963 = vor.u32 1.1754944e-38, %v962
    %v964 = vsel %vm961, %v963, %v959
    %v965 = vmul.f32 1.0, %v964
    %v967 = vrot.slane %v921, 6
    %v969 = vadd.f32 %v145, %v967
    %v970 = vxor.u32 %v969, 2147483648
    %v971 = vmul.f32 %v970, 1.442695
    %v972 = vpow.pop %v971
    %v973 = vadd.f32 %v972, 1.0
    %v974 = vrcp.pop %v973
    %v975 = vmul.f32 %v973, %v974
    %v976 = vsub.f32 1.0, %v975
    %v977 = vmul.f32 %v974, %v976
    %v978 = vadd.f32 %v974, %v977
    %vm979 = vweird.f32 %v973
    %vm980 = vweird.f32 %v974
    %vm981 = vmor %vm979, %vm980
    %v982 = vsel %vm981, %v974, %v978
    %v983 = vand.u32 2147483647, %v973
    %vm984 = vcmp.eq.f32.partialorder %v983, 8.507059e+37
    %v985 = vand.u32 %v973, 2147483648
    %v986 = vor.u32 1.1754944e-38, %v985
    %v987 = vsel %vm984, %v986, %v982
    %v988 = vmul.f32 1.0, %v987
    %v989 = vadd.f32 %v941, %v238
    %v991 = vrot.slane %v989, 6
    %v993 = vmul.f32 %v965, %v991
    %v994 = vadd.f32 %v168, %v993
    %v995 = vtanh.pop %v994
    %v996 = vsub.f32 1.0, %v988
    %v997 = vmul.f32 %v996, %v995
    %v999 = vrot.slane %v882, 6
    %v1001 = vmul.f32 %v988, %v999
    %v1002 = vadd.f32 %v997, %v1001
    %v1004 = vrot.slane %v1002, 2
    %1006 = vmatpush.msra.mxu0 %v297
    %1007 = vmatpush.msra.mxu0 %v294
    %1008 = vmatpush.msra.mxu0 %v291
    %1009 = vmatpush.msra.mxu0 %v288
    %1010 = vmatpush.msra.mxu0 %v285
    %1011 = vmatpush.msra.mxu0 %v282
    %1012 = vmatpush.msra.mxu0 %v279
    %1013 = vmatpush.msra.mxu0 %v276
    %1014 = vmatpush.msra.mxu0 %v273
    %1015 = vmatpush.msra.mxu0 %v270
    %1016 = vmatpush.msra.mxu0 %v267
    %1017 = vmatpush.msra.mxu0 %v264
    %1018 = vmatpush.msra.mxu0 %v261
    %1019 = vmatpush.msra.mxu0 %v258
    %1020 = vmatpush.msra.mxu0 %v255
    %1021 = vmatpush.msra.mxu0 %v252
    %1022 = vmatmul.f32.gmra.mxu0 %v1004
    %v1023 = vpop.f32.mrf.mxu0
    %v1024 = vadd.f32 0.0, %v1023
    %1025 = vdwg.mxu0
    %1026 = vmatpush.msra.mxu0 %v298
    %1027 = vmatpush.msra.mxu0 %v295
    %1028 = vmatpush.msra.mxu0 %v292
    %1029 = vmatpush.msra.mxu0 %v289
    %1030 = vmatpush.msra.mxu0 %v286
    %1031 = vmatpush.msra.mxu0 %v283
    %1032 = vmatpush.msra.mxu0 %v280
    %1033 = vmatpush.msra.mxu0 %v277
    %1034 = vmatpush.msra.mxu0 %v274
    %1035 = vmatpush.msra.mxu0 %v271
    %1036 = vmatpush.msra.mxu0 %v268
    %1037 = vmatpush.msra.mxu0 %v265
    %1038 = vmatpush.msra.mxu0 %v262
    %1039 = vmatpush.msra.mxu0 %v259
    %1040 = vmatpush.msra.mxu0 %v256
    %1041 = vmatpush.msra.mxu0 %v253
    %1042 = vmatmul.f32.gmra.mxu0 %v1004
    %v1043 = vpop.f32.mrf.mxu0
    %v1044 = vadd.f32 0.0, %v1043
    %1045 = vdwg.mxu0
    %1046 = vmatpush.msra.mxu0 %v299
    %1047 = vmatpush.msra.mxu0 %v296
    %1048 = vmatpush.msra.mxu0 %v293
    %1049 = vmatpush.msra.mxu0 %v290
    %1050 = vmatpush.msra.mxu0 %v287
    %1051 = vmatpush.msra.mxu0 %v284
    %1052 = vmatpush.msra.mxu0 %v281
    %1053 = vmatpush.msra.mxu0 %v278
    %1054 = vmatpush.msra.mxu0 %v275
    %1055 = vmatpush.msra.mxu0 %v272
    %1056 = vmatpush.msra.mxu0 %v269
    %1057 = vmatpush.msra.mxu0 %v266
    %1058 = vmatpush.msra.mxu0 %v263
    %1059 = vmatpush.msra.mxu0 %v260
    %1060 = vmatpush.msra.mxu0 %v257
    %1061 = vmatpush.msra.mxu0 %v254
    %1062 = vmatmul.f32.gmra.mxu0 %v1004
    %v1063 = vpop.f32.mrf.mxu0
    %v1064 = vadd.f32 0.0, %v1063
    %1065 = vdwg.mxu0
    %v1067 = vrot.slane %v1024, 4
    %v1069 = vadd.f32 %v122, %v1067
    %v1070 = vxor.u32 %v1069, 2147483648
    %v1071 = vmul.f32 %v1070, 1.442695
    %v1072 = vpow.pop %v1071
    %v1073 = vadd.f32 %v1072, 1.0
    %v1074 = vrcp.pop %v1073
    %v1075 = vmul.f32 %v1073, %v1074
    %v1076 = vsub.f32 1.0, %v1075
    %v1077 = vmul.f32 %v1074, %v1076
    %v1078 = vadd.f32 %v1074, %v1077
    %vm1079 = vweird.f32 %v1073
    %vm1080 = vweird.f32 %v1074
    %vm1081 = vmor %vm1079, %vm1080
    %v1082 = vsel %vm1081, %v1074, %v1078
    %v1083 = vand.u32 2147483647, %v1073
    %vm1084 = vcmp.eq.f32.partialorder %v1083, 8.507059e+37
    %v1085 = vand.u32 %v1073, 2147483648
    %v1086 = vor.u32 1.1754944e-38, %v1085
    %v1087 = vsel %vm1084, %v1086, %v1082
    %v1088 = vmul.f32 1.0, %v1087
    %v1090 = vrot.slane %v1044, 4
    %v1092 = vadd.f32 %v145, %v1090
    %v1093 = vxor.u32 %v1092, 2147483648
    %v1094 = vmul.f32 %v1093, 1.442695
    %v1095 = vpow.pop %v1094
    %v1096 = vadd.f32 %v1095, 1.0
    %v1097 = vrcp.pop %v1096
    %v1098 = vmul.f32 %v1096, %v1097
    %v1099 = vsub.f32 1.0, %v1098
    %v1100 = vmul.f32 %v1097, %v1099
    %v1101 = vadd.f32 %v1097, %v1100
    %vm1102 = vweird.f32 %v1096
    %vm1103 = vweird.f32 %v1097
    %vm1104 = vmor %vm1102, %vm1103
    %v1105 = vsel %vm1104, %v1097, %v1101
    %v1106 = vand.u32 2147483647, %v1096
    %vm1107 = vcmp.eq.f32.partialorder %v1106, 8.507059e+37
    %v1108 = vand.u32 %v1096, 2147483648
    %v1109 = vor.u32 1.1754944e-38, %v1108
    %v1110 = vsel %vm1107, %v1109, %v1105
    %v1111 = vmul.f32 1.0, %v1110
    %v1112 = vadd.f32 %v1064, %v238
    %v1114 = vrot.slane %v1112, 4
    %v1116 = vmul.f32 %v1088, %v1114
    %v1117 = vadd.f32 %v168, %v1116
    %v1118 = vtanh.pop %v1117
    %v1119 = vsub.f32 1.0, %v1111
    %v1120 = vmul.f32 %v1119, %v1118
    %v1121 = vrot.slane %v1002, 6
    %v1123 = vmul.f32 %v1111, %v1121
    %v1124 = vadd.f32 %v1120, %v1123
    %v1126 = vrot.slane %v1124, 4
    %1128 = vmatpush.msra.mxu0 %v297
    %1129 = vmatpush.msra.mxu0 %v294
    %1130 = vmatpush.msra.mxu0 %v291
    %1131 = vmatpush.msra.mxu0 %v288
    %1132 = vmatpush.msra.mxu0 %v285
    %1133 = vmatpush.msra.mxu0 %v282
    %1134 = vmatpush.msra.mxu0 %v279
    %1135 = vmatpush.msra.mxu0 %v276
    %1136 = vmatpush.msra.mxu0 %v273
    %1137 = vmatpush.msra.mxu0 %v270
    %1138 = vmatpush.msra.mxu0 %v267
    %1139 = vmatpush.msra.mxu0 %v264
    %1140 = vmatpush.msra.mxu0 %v261
    %1141 = vmatpush.msra.mxu0 %v258
    %1142 = vmatpush.msra.mxu0 %v255
    %1143 = vmatpush.msra.mxu0 %v252
    %1144 = vmatmul.f32.gmra.mxu0 %v1126
    %v1145 = vpop.f32.mrf.mxu0
    %v1146 = vadd.f32 0.0, %v1145
    %1147 = vdwg.mxu0
    %1148 = vmatpush.msra.mxu0 %v298
    %1149 = vmatpush.msra.mxu0 %v295
    %1150 = vmatpush.msra.mxu0 %v292
    %1151 = vmatpush.msra.mxu0 %v289
    %1152 = vmatpush.msra.mxu0 %v286
    %1153 = vmatpush.msra.mxu0 %v283
    %1154 = vmatpush.msra.mxu0 %v280
    %1155 = vmatpush.msra.mxu0 %v277
    %1156 = vmatpush.msra.mxu0 %v274
    %1157 = vmatpush.msra.mxu0 %v271
    %1158 = vmatpush.msra.mxu0 %v268
    %1159 = vmatpush.msra.mxu0 %v265
    %1160 = vmatpush.msra.mxu0 %v262
    %1161 = vmatpush.msra.mxu0 %v259
    %1162 = vmatpush.msra.mxu0 %v256
    %1163 = vmatpush.msra.mxu0 %v253
    %1164 = vmatmul.f32.gmra.mxu0 %v1126
    %v1165 = vpop.f32.mrf.mxu0
    %v1166 = vadd.f32 0.0, %v1165
    %1167 = vdwg.mxu0
    %1168 = vmatpush.msra.mxu0 %v299
    %1169 = vmatpush.msra.mxu0 %v296
    %1170 = vmatpush.msra.mxu0 %v293
    %1171 = vmatpush.msra.mxu0 %v290
    %1172 = vmatpush.msra.mxu0 %v287
    %1173 = vmatpush.msra.mxu0 %v284
    %1174 = vmatpush.msra.mxu0 %v281
    %1175 = vmatpush.msra.mxu0 %v278
    %1176 = vmatpush.msra.mxu0 %v275
    %1177 = vmatpush.msra.mxu0 %v272
    %1178 = vmatpush.msra.mxu0 %v269
    %1179 = vmatpush.msra.mxu0 %v266
    %1180 = vmatpush.msra.mxu0 %v263
    %1181 = vmatpush.msra.mxu0 %v260
    %1182 = vmatpush.msra.mxu0 %v257
    %1183 = vmatpush.msra.mxu0 %v254
    %1184 = vmatmul.f32.gmra.mxu0 %v1126
    %v1185 = vpop.f32.mrf.mxu0
    %v1186 = vadd.f32 0.0, %v1185
    %1187 = vdwg.mxu0
    %v1189 = vrot.slane %v1146, 2
    %v1191 = vadd.f32 %v122, %v1189
    %v1192 = vxor.u32 %v1191, 2147483648
    %v1193 = vmul.f32 %v1192, 1.442695
    %v1194 = vpow.pop %v1193
    %v1195 = vadd.f32 %v1194, 1.0
    %v1196 = vrcp.pop %v1195
    %v1197 = vmul.f32 %v1195, %v1196
    %v1198 = vsub.f32 1.0, %v1197
    %v1199 = vmul.f32 %v1196, %v1198
    %v1200 = vadd.f32 %v1196, %v1199
    %vm1201 = vweird.f32 %v1195
    %vm1202 = vweird.f32 %v1196
    %vm1203 = vmor %vm1201, %vm1202
    %v1204 = vsel %vm1203, %v1196, %v1200
    %v1205 = vand.u32 2147483647, %v1195
    %vm1206 = vcmp.eq.f32.partialorder %v1205, 8.507059e+37
    %v1207 = vand.u32 %v1195, 2147483648
    %v1208 = vor.u32 1.1754944e-38, %v1207
    %v1209 = vsel %vm1206, %v1208, %v1204
    %v1210 = vmul.f32 1.0, %v1209
    %v1212 = vrot.slane %v1166, 2
    %v1214 = vadd.f32 %v145, %v1212
    %v1215 = vxor.u32 %v1214, 2147483648
    %v1216 = vmul.f32 %v1215, 1.442695
    %v1217 = vpow.pop %v1216
    %v1218 = vadd.f32 %v1217, 1.0
    %v1219 = vrcp.pop %v1218
    %v1220 = vmul.f32 %v1218, %v1219
    %v1221 = vsub.f32 1.0, %v1220
    %v1222 = vmul.f32 %v1219, %v1221
    %v1223 = vadd.f32 %v1219, %v1222
    %vm1224 = vweird.f32 %v1218
    %vm1225 = vweird.f32 %v1219
    %vm1226 = vmor %vm1224, %vm1225
    %v1227 = vsel %vm1226, %v1219, %v1223
    %v1228 = vand.u32 2147483647, %v1218
    %vm1229 = vcmp.eq.f32.partialorder %v1228, 8.507059e+37
    %v1230 = vand.u32 %v1218, 2147483648
    %v1231 = vor.u32 1.1754944e-38, %v1230
    %v1232 = vsel %vm1229, %v1231, %v1227
    %v1233 = vmul.f32 1.0, %v1232
    %v1234 = vadd.f32 %v1186, %v238
    %v1236 = vrot.slane %v1234, 2
    %v1238 = vmul.f32 %v1210, %v1236
    %v1239 = vadd.f32 %v168, %v1238
    %v1240 = vtanh.pop %v1239
    %v1241 = vsub.f32 1.0, %v1233
    %v1242 = vmul.f32 %v1241, %v1240
    %v1243 = vrot.slane %v1124, 6
    %v1245 = vmul.f32 %v1233, %v1243
    %v1246 = vadd.f32 %v1242, %v1245
    %v1247 = vld [vmem:[#allocation6 + $0x30] sm:$0xff]
    %v1248 = vld [vmem:[#allocation6 + $0x38] sm:$0xff]
    %v1249 = vld [vmem:[#allocation6 + $0x40] sm:$0xff]
    %v1250 = vld [vmem:[#allocation6 + $0x80] sm:$0xff]
    %v1251 = vld [vmem:[#allocation6 + $0x88] sm:$0xff]
    %v1252 = vld [vmem:[#allocation6 + $0x90] sm:$0xff]
    %v1253 = vld [vmem:[#allocation6 + $0xd0] sm:$0xff]
    %v1254 = vld [vmem:[#allocation6 + $0xd8] sm:$0xff]
    %v1255 = vld [vmem:[#allocation6 + $0xe0] sm:$0xff]
    %v1256 = vld [vmem:[#allocation6 + $0x120] sm:$0xff]
    %v1257 = vld [vmem:[#allocation6 + $0x128] sm:$0xff]
    %v1258 = vld [vmem:[#allocation6 + $0x130] sm:$0xff]
    %v1259 = vld [vmem:[#allocation6 + $0x170] sm:$0xff]
    %v1260 = vld [vmem:[#allocation6 + $0x178] sm:$0xff]
    %v1261 = vld [vmem:[#allocation6 + $0x180] sm:$0xff]
    %v1262 = vld [vmem:[#allocation6 + $0x1c0] sm:$0xff]
    %v1263 = vld [vmem:[#allocation6 + $0x1c8] sm:$0xff]
    %v1264 = vld [vmem:[#allocation6 + $0x1d0] sm:$0xff]
    %v1265 = vld [vmem:[#allocation6 + $0x210] sm:$0xff]
    %v1266 = vld [vmem:[#allocation6 + $0x218] sm:$0xff]
    %v1267 = vld [vmem:[#allocation6 + $0x220] sm:$0xff]
    %v1268 = vld [vmem:[#allocation6 + $0x260] sm:$0xff]
    %v1269 = vld [vmem:[#allocation6 + $0x268] sm:$0xff]
    %v1270 = vld [vmem:[#allocation6 + $0x270] sm:$0xff]
    %v1271 = vld [vmem:[#allocation6 + $0x2b0] sm:$0xff]
    %v1272 = vld [vmem:[#allocation6 + $0x2b8] sm:$0xff]
    %v1273 = vld [vmem:[#allocation6 + $0x2c0] sm:$0xff]
    %v1274 = vld [vmem:[#allocation6 + $0x300] sm:$0xff]
    %v1275 = vld [vmem:[#allocation6 + $0x308] sm:$0xff]
    %v1276 = vld [vmem:[#allocation6 + $0x310] sm:$0xff]
    %v1277 = vld [vmem:[#allocation6 + $0x350] sm:$0xff]
    %v1278 = vld [vmem:[#allocation6 + $0x358] sm:$0xff]
    %v1279 = vld [vmem:[#allocation6 + $0x360] sm:$0xff]
    %v1280 = vld [vmem:[#allocation6 + $0x3a0] sm:$0xff]
    %v1281 = vld [vmem:[#allocation6 + $0x3a8] sm:$0xff]
    %v1282 = vld [vmem:[#allocation6 + $0x3b0] sm:$0xff]
    %v1283 = vld [vmem:[#allocation6 + $0x3f0] sm:$0xff]
    %v1284 = vld [vmem:[#allocation6 + $0x3f8] sm:$0xff]
    %v1285 = vld [vmem:[#allocation6 + $0x400] sm:$0xff]
    %v1286 = vld [vmem:[#allocation6 + $0x440] sm:$0xff]
    %v1287 = vld [vmem:[#allocation6 + $0x448] sm:$0xff]
    %v1288 = vld [vmem:[#allocation6 + $0x450] sm:$0xff]
    %v1289 = vld [vmem:[#allocation6 + $0x490] sm:$0xff]
    %v1290 = vld [vmem:[#allocation6 + $0x498] sm:$0xff]
    %v1291 = vld [vmem:[#allocation6 + $0x4a0] sm:$0xff]
    %v1292 = vld [vmem:[#allocation6 + $0x4e0] sm:$0xff]
    %v1293 = vld [vmem:[#allocation6 + $0x4e8] sm:$0xff]
    %v1294 = vld [vmem:[#allocation6 + $0x4f0] sm:$0xff]
    %v1296 = vrot.slane %v1246, 6
    %1298 = vmatpush.msra.mxu0 %v1292
    %1299 = vmatpush.msra.mxu0 %v1289
    %1300 = vmatpush.msra.mxu0 %v1286
    %1301 = vmatpush.msra.mxu0 %v1283
    %1302 = vmatpush.msra.mxu0 %v1280
    %1303 = vmatpush.msra.mxu0 %v1277
    %1304 = vmatpush.msra.mxu0 %v1274
    %1305 = vmatpush.msra.mxu0 %v1271
    %1306 = vmatpush.msra.mxu0 %v1268
    %1307 = vmatpush.msra.mxu0 %v1265
    %1308 = vmatpush.msra.mxu0 %v1262
    %1309 = vmatpush.msra.mxu0 %v1259
    %1310 = vmatpush.msra.mxu0 %v1256
    %1311 = vmatpush.msra.mxu0 %v1253
    %1312 = vmatpush.msra.mxu0 %v1250
    %1313 = vmatpush.msra.mxu0 %v1247
    %1314 = vmatmul.f32.gmra.mxu0 %v1296
    %v1315 = vpop.f32.mrf.mxu0
    %v1316 = vadd.f32 0.0, %v1315
    %1317 = vdwg.mxu0
    %1318 = vmatpush.msra.mxu0 %v1293
    %1319 = vmatpush.msra.mxu0 %v1290
    %1320 = vmatpush.msra.mxu0 %v1287
    %1321 = vmatpush.msra.mxu0 %v1284
    %1322 = vmatpush.msra.mxu0 %v1281
    %1323 = vmatpush.msra.mxu0 %v1278
    %1324 = vmatpush.msra.mxu0 %v1275
    %1325 = vmatpush.msra.mxu0 %v1272
    %1326 = vmatpush.msra.mxu0 %v1269
    %1327 = vmatpush.msra.mxu0 %v1266
    %1328 = vmatpush.msra.mxu0 %v1263
    %1329 = vmatpush.msra.mxu0 %v1260
    %1330 = vmatpush.msra.mxu0 %v1257
    %1331 = vmatpush.msra.mxu0 %v1254
    %1332 = vmatpush.msra.mxu0 %v1251
    %1333 = vmatpush.msra.mxu0 %v1248
    %1334 = vmatmul.f32.gmra.mxu0 %v1296
    %v1335 = vpop.f32.mrf.mxu0
    %v1336 = vadd.f32 0.0, %v1335
    %1337 = vdwg.mxu0
    %1338 = vmatpush.msra.mxu0 %v1294
    %1339 = vmatpush.msra.mxu0 %v1291
    %1340 = vmatpush.msra.mxu0 %v1288
    %1341 = vmatpush.msra.mxu0 %v1285
    %1342 = vmatpush.msra.mxu0 %v1282
    %1343 = vmatpush.msra.mxu0 %v1279
    %1344 = vmatpush.msra.mxu0 %v1276
    %1345 = vmatpush.msra.mxu0 %v1273
    %1346 = vmatpush.msra.mxu0 %v1270
    %1347 = vmatpush.msra.mxu0 %v1267
    %1348 = vmatpush.msra.mxu0 %v1264
    %1349 = vmatpush.msra.mxu0 %v1261
    %1350 = vmatpush.msra.mxu0 %v1258
    %1351 = vmatpush.msra.mxu0 %v1255
    %1352 = vmatpush.msra.mxu0 %v1252
    %1353 = vmatpush.msra.mxu0 %v1249
    %1354 = vmatmul.f32.gmra.mxu0 %v1296
    %v1355 = vpop.f32.mrf.mxu0
    %v1356 = vadd.f32 0.0, %v1355
    %1357 = vdwg.mxu0
    %v1359 = vrot.slane %v1316, 2
    %v1361 = vadd.f32 %v190, %v1359
    %v1362 = vxor.u32 %v1361, 2147483648
    %v1363 = vmul.f32 %v1362, 1.442695
    %v1364 = vpow.pop %v1363
    %v1365 = vadd.f32 %v1364, 1.0
    %v1366 = vrcp.pop %v1365
    %v1367 = vmul.f32 %v1365, %v1366
    %v1368 = vsub.f32 1.0, %v1367
    %v1369 = vmul.f32 %v1366, %v1368
    %v1370 = vadd.f32 %v1366, %v1369
    %vm1371 = vweird.f32 %v1365
    %vm1372 = vweird.f32 %v1366
    %vm1373 = vmor %vm1371, %vm1372
    %v1374 = vsel %vm1373, %v1366, %v1370
    %v1375 = vand.u32 2147483647, %v1365
    %vm1376 = vcmp.eq.f32.partialorder %v1375, 8.507059e+37
    %v1377 = vand.u32 %v1365, 2147483648
    %v1378 = vor.u32 1.1754944e-38, %v1377
    %v1379 = vsel %vm1376, %v1378, %v1374
    %v1380 = vmul.f32 1.0, %v1379
    %v1382 = vrot.slane %v1336, 2
    %v1384 = vadd.f32 %v212, %v1382
    %v1385 = vxor.u32 %v1384, 2147483648
    %v1386 = vmul.f32 %v1385, 1.442695
    %v1387 = vpow.pop %v1386
    %v1388 = vadd.f32 %v1387, 1.0
    %v1389 = vrcp.pop %v1388
    %v1390 = vmul.f32 %v1388, %v1389
    %v1391 = vsub.f32 1.0, %v1390
    %v1392 = vmul.f32 %v1389, %v1391
    %v1393 = vadd.f32 %v1389, %v1392
    %vm1394 = vweird.f32 %v1388
    %vm1395 = vweird.f32 %v1389
    %vm1396 = vmor %vm1394, %vm1395
    %v1397 = vsel %vm1396, %v1389, %v1393
    %v1398 = vand.u32 2147483647, %v1388
    %vm1399 = vcmp.eq.f32.partialorder %v1398, 8.507059e+37
    %v1400 = vand.u32 %v1388, 2147483648
    %v1401 = vor.u32 1.1754944e-38, %v1400
    %v1402 = vsel %vm1399, %v1401, %v1397
    %v1403 = vmul.f32 1.0, %v1402
    %v1404 = vadd.f32 %v1356, %v242
    %v1406 = vrot.slane %v1404, 2
    %v1408 = vmul.f32 %v1380, %v1406
    %v1409 = vadd.f32 %v234, %v1408
    %v1410 = vtanh.pop %v1409
    %v1411 = vsub.f32 1.0, %v1403
    %v1412 = vmul.f32 %v1411, %v1410
    %v1413 = vmul.f32 %v1403, %v1246
    %v1414 = vadd.f32 %v1412, %v1413
    %1415 = vst [vmem:[#allocation2 - $0x6] sm:$0xc0] %v1414
    %v1416 = vld [vmem:[#allocation6 + $0x18] sm:$0xff]
    %v1417 = vld [vmem:[#allocation6 + $0x20] sm:$0xff]
    %v1418 = vld [vmem:[#allocation6 + $0x28] sm:$0xff]
    %v1419 = vld [vmem:[#allocation6 + $0x30] sm:$0xff]
    %v1420 = vld [vmem:[#allocation6 + $0x38] sm:$0xff]
    %v1421 = vld [vmem:[#allocation6 + $0x40] sm:$0xff]
    %v1422 = vld [vmem:[#allocation6 + $0x68] sm:$0xff]
    %v1423 = vld [vmem:[#allocation6 + $0x70] sm:$0xff]
    %v1424 = vld [vmem:[#allocation6 + $0x78] sm:$0xff]
    %v1425 = vld [vmem:[#allocation6 + $0x80] sm:$0xff]
    %v1426 = vld [vmem:[#allocation6 + $0x88] sm:$0xff]
    %v1427 = vld [vmem:[#allocation6 + $0x90] sm:$0xff]
    %v1428 = vld [vmem:[#allocation6 + $0xb8] sm:$0xff]
    %v1429 = vld [vmem:[#allocation6 + $0xc0] sm:$0xff]
    %v1430 = vld [vmem:[#allocation6 + $0xc8] sm:$0xff]
    %v1431 = vld [vmem:[#allocation6 + $0xd0] sm:$0xff]
    %v1432 = vld [vmem:[#allocation6 + $0xd8] sm:$0xff]
    %v1433 = vld [vmem:[#allocation6 + $0xe0] sm:$0xff]
    %v1434 = vld [vmem:[#allocation6 + $0x108] sm:$0xff]
    %v1435 = vld [vmem:[#allocation6 + $0x110] sm:$0xff]
    %v1436 = vld [vmem:[#allocation6 + $0x118] sm:$0xff]
    %v1437 = vld [vmem:[#allocation6 + $0x120] sm:$0xff]
    %v1438 = vld [vmem:[#allocation6 + $0x128] sm:$0xff]
    %v1439 = vld [vmem:[#allocation6 + $0x130] sm:$0xff]
    %v1440 = vld [vmem:[#allocation6 + $0x158] sm:$0xff]
    %v1441 = vld [vmem:[#allocation6 + $0x160] sm:$0xff]
    %v1442 = vld [vmem:[#allocation6 + $0x168] sm:$0xff]
    %v1443 = vld [vmem:[#allocation6 + $0x170] sm:$0xff]
    %v1444 = vld [vmem:[#allocation6 + $0x178] sm:$0xff]
    %v1445 = vld [vmem:[#allocation6 + $0x180] sm:$0xff]
    %v1446 = vld [vmem:[#allocation6 + $0x1a8] sm:$0xff]
    %v1447 = vld [vmem:[#allocation6 + $0x1b0] sm:$0xff]
    %v1448 = vld [vmem:[#allocation6 + $0x1b8] sm:$0xff]
    %v1449 = vld [vmem:[#allocation6 + $0x1c0] sm:$0xff]
    %v1450 = vld [vmem:[#allocation6 + $0x1c8] sm:$0xff]
    %v1451 = vld [vmem:[#allocation6 + $0x1d0] sm:$0xff]
    %v1452 = vld [vmem:[#allocation6 + $0x1f8] sm:$0xff]
    %v1453 = vld [vmem:[#allocation6 + $0x200] sm:$0xff]
    %v1454 = vld [vmem:[#allocation6 + $0x208] sm:$0xff]
    %v1455 = vld [vmem:[#allocation6 + $0x210] sm:$0xff]
    %v1456 = vld [vmem:[#allocation6 + $0x218] sm:$0xff]
    %v1457 = vld [vmem:[#allocation6 + $0x220] sm:$0xff]
    %v1458 = vld [vmem:[#allocation6 + $0x248] sm:$0xff]
    %v1459 = vld [vmem:[#allocation6 + $0x250] sm:$0xff]
    %v1460 = vld [vmem:[#allocation6 + $0x258] sm:$0xff]
    %v1461 = vld [vmem:[#allocation6 + $0x260] sm:$0xff]
    %v1462 = vld [vmem:[#allocation6 + $0x268] sm:$0xff]
    %v1463 = vld [vmem:[#allocation6 + $0x270] sm:$0xff]
    %v1464 = vld [vmem:[#allocation6 + $0x298] sm:$0xff]
    %v1465 = vld [vmem:[#allocation6 + $0x2a0] sm:$0xff]
    %v1466 = vld [vmem:[#allocation6 + $0x2a8] sm:$0xff]
    %v1467 = vld [vmem:[#allocation6 + $0x2b0] sm:$0xff]
    %v1468 = vld [vmem:[#allocation6 + $0x2b8] sm:$0xff]
    %v1469 = vld [vmem:[#allocation6 + $0x2c0] sm:$0xff]
    %v1470 = vld [vmem:[#allocation6 + $0x2e8] sm:$0xff]
    %v1471 = vld [vmem:[#allocation6 + $0x2f0] sm:$0xff]
    %v1472 = vld [vmem:[#allocation6 + $0x2f8] sm:$0xff]
    %v1473 = vld [vmem:[#allocation6 + $0x300] sm:$0xff]
    %v1474 = vld [vmem:[#allocation6 + $0x308] sm:$0xff]
    %v1475 = vld [vmem:[#allocation6 + $0x310] sm:$0xff]
    %v1476 = vld [vmem:[#allocation6 + $0x338] sm:$0xff]
    %v1477 = vld [vmem:[#allocation6 + $0x340] sm:$0xff]
    %v1478 = vld [vmem:[#allocation6 + $0x348] sm:$0xff]
    %v1479 = vld [vmem:[#allocation6 + $0x350] sm:$0xff]
    %v1480 = vld [vmem:[#allocation6 + $0x358] sm:$0xff]
    %v1481 = vld [vmem:[#allocation6 + $0x360] sm:$0xff]
    %v1482 = vld [vmem:[#allocation6 + $0x388] sm:$0xff]
    %v1483 = vld [vmem:[#allocation6 + $0x390] sm:$0xff]
    %v1484 = vld [vmem:[#allocation6 + $0x398] sm:$0xff]
    %v1485 = vld [vmem:[#allocation6 + $0x3a0] sm:$0xff]
    %v1486 = vld [vmem:[#allocation6 + $0x3a8] sm:$0xff]
    %v1487 = vld [vmem:[#allocation6 + $0x3b0] sm:$0xff]
    %v1488 = vld [vmem:[#allocation6 + $0x3d8] sm:$0xff]
    %v1489 = vld [vmem:[#allocation6 + $0x3e0] sm:$0xff]
    %v1490 = vld [vmem:[#allocation6 + $0x3e8] sm:$0xff]
    %v1491 = vld [vmem:[#allocation6 + $0x3f0] sm:$0xff]
    %v1492 = vld [vmem:[#allocation6 + $0x3f8] sm:$0xff]
    %v1493 = vld [vmem:[#allocation6 + $0x400] sm:$0xff]
    %v1494 = vld [vmem:[#allocation6 + $0x428] sm:$0xff]
    %v1495 = vld [vmem:[#allocation6 + $0x430] sm:$0xff]
    %v1496 = vld [vmem:[#allocation6 + $0x438] sm:$0xff]
    %v1497 = vld [vmem:[#allocation6 + $0x440] sm:$0xff]
    %v1498 = vld [vmem:[#allocation6 + $0x448] sm:$0xff]
    %v1499 = vld [vmem:[#allocation6 + $0x450] sm:$0xff]
    %v1500 = vld [vmem:[#allocation6 + $0x478] sm:$0xff]
    %v1501 = vld [vmem:[#allocation6 + $0x480] sm:$0xff]
    %v1502 = vld [vmem:[#allocation6 + $0x488] sm:$0xff]
    %v1503 = vld [vmem:[#allocation6 + $0x490] sm:$0xff]
    %v1504 = vld [vmem:[#allocation6 + $0x498] sm:$0xff]
    %v1505 = vld [vmem:[#allocation6 + $0x4a0] sm:$0xff]
    %v1506 = vld [vmem:[#allocation6 + $0x4c8] sm:$0xff]
    %v1507 = vld [vmem:[#allocation6 + $0x4d0] sm:$0xff]
    %v1508 = vld [vmem:[#allocation6 + $0x4d8] sm:$0xff]
    %v1509 = vld [vmem:[#allocation6 + $0x4e0] sm:$0xff]
    %v1510 = vld [vmem:[#allocation6 + $0x4e8] sm:$0xff]
    %v1511 = vld [vmem:[#allocation6 + $0x4f0] sm:$0xff]
    %v1513 = vrot.slane %v1414, 6
    %1515 = vmatpush.msra.mxu0 %v1506
    %1516 = vmatpush.msra.mxu0 %v1500
    %1517 = vmatpush.msra.mxu0 %v1494
    %1518 = vmatpush.msra.mxu0 %v1488
    %1519 = vmatpush.msra.mxu0 %v1482
    %1520 = vmatpush.msra.mxu0 %v1476
    %1521 = vmatpush.msra.mxu0 %v1470
    %1522 = vmatpush.msra.mxu0 %v1464
    %1523 = vmatpush.msra.mxu0 %v1458
    %1524 = vmatpush.msra.mxu0 %v1452
    %1525 = vmatpush.msra.mxu0 %v1446
    %1526 = vmatpush.msra.mxu0 %v1440
    %1527 = vmatpush.msra.mxu0 %v1434
    %1528 = vmatpush.msra.mxu0 %v1428
    %1529 = vmatpush.msra.mxu0 %v1422
    %1530 = vmatpush.msra.mxu0 %v1416
    %1531 = vmatmul.f32.gmra.mxu0 %v1513
    %v1532 = vpop.f32.mrf.mxu0
    %v1533 = vadd.f32 0.0, %v1532
    %1534 = vdwg.mxu0
    %1535 = vmatpush.msra.mxu0 %v1507
    %1536 = vmatpush.msra.mxu0 %v1501
    %1537 = vmatpush.msra.mxu0 %v1495
    %1538 = vmatpush.msra.mxu0 %v1489
    %1539 = vmatpush.msra.mxu0 %v1483
    %1540 = vmatpush.msra.mxu0 %v1477
    %1541 = vmatpush.msra.mxu0 %v1471
    %1542 = vmatpush.msra.mxu0 %v1465
    %1543 = vmatpush.msra.mxu0 %v1459
    %1544 = vmatpush.msra.mxu0 %v1453
    %1545 = vmatpush.msra.mxu0 %v1447
    %1546 = vmatpush.msra.mxu0 %v1441
    %1547 = vmatpush.msra.mxu0 %v1435
    %1548 = vmatpush.msra.mxu0 %v1429
    %1549 = vmatpush.msra.mxu0 %v1423
    %1550 = vmatpush.msra.mxu0 %v1417
    %1551 = vmatmul.f32.gmra.mxu0 %v1513
    %v1552 = vpop.f32.mrf.mxu0
    %v1553 = vadd.f32 0.0, %v1552
    %1554 = vdwg.mxu0
    %1555 = vmatpush.msra.mxu0 %v1508
    %1556 = vmatpush.msra.mxu0 %v1502
    %1557 = vmatpush.msra.mxu0 %v1496
    %1558 = vmatpush.msra.mxu0 %v1490
    %1559 = vmatpush.msra.mxu0 %v1484
    %1560 = vmatpush.msra.mxu0 %v1478
    %1561 = vmatpush.msra.mxu0 %v1472
    %1562 = vmatpush.msra.mxu0 %v1466
    %1563 = vmatpush.msra.mxu0 %v1460
    %1564 = vmatpush.msra.mxu0 %v1454
    %1565 = vmatpush.msra.mxu0 %v1448
    %1566 = vmatpush.msra.mxu0 %v1442
    %1567 = vmatpush.msra.mxu0 %v1436
    %1568 = vmatpush.msra.mxu0 %v1430
    %1569 = vmatpush.msra.mxu0 %v1424
    %1570 = vmatpush.msra.mxu0 %v1418
    %1571 = vmatmul.f32.gmra.mxu0 %v1513
    %v1572 = vpop.f32.mrf.mxu0
    %v1573 = vadd.f32 0.0, %v1572
    %1574 = vdwg.mxu0
    %1575 = vmatpush.msra.mxu0 %v1509
    %1576 = vmatpush.msra.mxu0 %v1503
    %1577 = vmatpush.msra.mxu0 %v1497
    %1578 = vmatpush.msra.mxu0 %v1491
    %1579 = vmatpush.msra.mxu0 %v1485
    %1580 = vmatpush.msra.mxu0 %v1479
    %1581 = vmatpush.msra.mxu0 %v1473
    %1582 = vmatpush.msra.mxu0 %v1467
    %1583 = vmatpush.msra.mxu0 %v1461
    %1584 = vmatpush.msra.mxu0 %v1455
    %1585 = vmatpush.msra.mxu0 %v1449
    %1586 = vmatpush.msra.mxu0 %v1443
    %1587 = vmatpush.msra.mxu0 %v1437
    %1588 = vmatpush.msra.mxu0 %v1431
    %1589 = vmatpush.msra.mxu0 %v1425
    %1590 = vmatpush.msra.mxu0 %v1419
    %1591 = vmatmul.f32.gmra.mxu0 %v1513
    %v1592 = vpop.f32.mrf.mxu0
    %v1593 = vadd.f32 0.0, %v1592
    %1594 = vdwg.mxu0
    %1595 = vmatpush.msra.mxu0 %v1510
    %1596 = vmatpush.msra.mxu0 %v1504
    %1597 = vmatpush.msra.mxu0 %v1498
    %1598 = vmatpush.msra.mxu0 %v1492
    %1599 = vmatpush.msra.mxu0 %v1486
    %1600 = vmatpush.msra.mxu0 %v1480
    %1601 = vmatpush.msra.mxu0 %v1474
    %1602 = vmatpush.msra.mxu0 %v1468
    %1603 = vmatpush.msra.mxu0 %v1462
    %1604 = vmatpush.msra.mxu0 %v1456
    %1605 = vmatpush.msra.mxu0 %v1450
    %1606 = vmatpush.msra.mxu0 %v1444
    %1607 = vmatpush.msra.mxu0 %v1438
    %1608 = vmatpush.msra.mxu0 %v1432
    %1609 = vmatpush.msra.mxu0 %v1426
    %1610 = vmatpush.msra.mxu0 %v1420
    %1611 = vmatmul.f32.gmra.mxu0 %v1513
    %v1612 = vpop.f32.mrf.mxu0
    %v1613 = vadd.f32 0.0, %v1612
    %1614 = vdwg.mxu0
    %1615 = vmatpush.msra.mxu0 %v1511
    %1616 = vmatpush.msra.mxu0 %v1505
    %1617 = vmatpush.msra.mxu0 %v1499
    %1618 = vmatpush.msra.mxu0 %v1493
    %1619 = vmatpush.msra.mxu0 %v1487
    %1620 = vmatpush.msra.mxu0 %v1481
    %1621 = vmatpush.msra.mxu0 %v1475
    %1622 = vmatpush.msra.mxu0 %v1469
    %1623 = vmatpush.msra.mxu0 %v1463
    %1624 = vmatpush.msra.mxu0 %v1457
    %1625 = vmatpush.msra.mxu0 %v1451
    %1626 = vmatpush.msra.mxu0 %v1445
    %1627 = vmatpush.msra.mxu0 %v1439
    %1628 = vmatpush.msra.mxu0 %v1433
    %1629 = vmatpush.msra.mxu0 %v1427
    %1630 = vmatpush.msra.mxu0 %v1421
    %1631 = vmatmul.f32.gmra.mxu0 %v1513
    %v1632 = vpop.f32.mrf.mxu0
    %v1633 = vadd.f32 0.0, %v1632
    %1634 = vdwg.mxu0
    %v1635 = vadd.f32 %v1533, %v246
    %v1636 = vadd.f32 %v1553, %v247
    %v1637 = vadd.f32 %v1573, %v248
    %v1638 = vadd.f32 %v1635, %v1593
    %v1639 = vxor.u32 %v1638, 2147483648
    %v1640 = vmul.f32 %v1639, 1.442695
    %v1641 = vpow.pop %v1640
    %v1642 = vadd.f32 %v1641, 1.0
    %v1643 = vrcp.pop %v1642
    %v1644 = vmul.f32 %v1642, %v1643
    %v1645 = vsub.f32 1.0, %v1644
    %v1646 = vmul.f32 %v1643, %v1645
    %v1647 = vadd.f32 %v1643, %v1646
    %vm1648 = vweird.f32 %v1642
    %vm1649 = vweird.f32 %v1643
    %vm1650 = vmor %vm1648, %vm1649
    %v1651 = vsel %vm1650, %v1643, %v1647
    %v1652 = vand.u32 2147483647, %v1642
    %vm1653 = vcmp.eq.f32.partialorder %v1652, 8.507059e+37
    %v1654 = vand.u32 %v1642, 2147483648
    %v1655 = vor.u32 1.1754944e-38, %v1654
    %v1656 = vsel %vm1653, %v1655, %v1651
    %v1657 = vmul.f32 1.0, %v1656
    %v1658 = vadd.f32 %v1636, %v1613
    %v1659 = vxor.u32 %v1658, 2147483648
    %v1660 = vmul.f32 %v1659, 1.442695
    %v1661 = vpow.pop %v1660
    %v1662 = vadd.f32 %v1661, 1.0
    %v1663 = vrcp.pop %v1662
    %v1664 = vmul.f32 %v1662, %v1663
    %v1665 = vsub.f32 1.0, %v1664
    %v1666 = vmul.f32 %v1663, %v1665
    %v1667 = vadd.f32 %v1663, %v1666
    %vm1668 = vweird.f32 %v1662
    %vm1669 = vweird.f32 %v1663
    %vm1670 = vmor %vm1668, %vm1669
    %v1671 = vsel %vm1670, %v1663, %v1667
    %v1672 = vand.u32 2147483647, %v1662
    %vm1673 = vcmp.eq.f32.partialorder %v1672, 8.507059e+37
    %v1674 = vand.u32 %v1662, 2147483648
    %v1675 = vor.u32 1.1754944e-38, %v1674
    %v1676 = vsel %vm1673, %v1675, %v1671
    %v1677 = vmul.f32 1.0, %v1676
    %v1678 = vadd.f32 %v1633, %v242
    %v1679 = vmul.f32 %v1657, %v1678
    %v1680 = vadd.f32 %v1637, %v1679
    %v1681 = vtanh.pop %v1680
    %v1682 = vsub.f32 1.0, %v1677
    %v1683 = vmul.f32 %v1682, %v1681
    %v1684 = vmul.f32 %v1677, %v1513
    %v1685 = vadd.f32 %v1683, %v1684
    %1686 = vst [vmem:[#allocation2 + $0x2] sm:$0x3] %v1685
    %v1687 = vld [vmem:[#allocation6 + $0x18] sm:$0xff]
    %v1688 = vld [vmem:[#allocation6 + $0x20] sm:$0xff]
    %v1689 = vld [vmem:[#allocation6 + $0x28] sm:$0xff]
    %v1690 = vld [vmem:[#allocation6 + $0x30] sm:$0xff]
    %v1691 = vld [vmem:[#allocation6 + $0x38] sm:$0xff]
    %v1692 = vld [vmem:[#allocation6 + $0x40] sm:$0xff]
    %v1693 = vld [vmem:[#allocation6 + $0x68] sm:$0xff]
    %v1694 = vld [vmem:[#allocation6 + $0x70] sm:$0xff]
    %v1695 = vld [vmem:[#allocation6 + $0x78] sm:$0xff]
    %v1696 = vld [vmem:[#allocation6 + $0x80] sm:$0xff]
    %v1697 = vld [vmem:[#allocation6 + $0x88] sm:$0xff]
    %v1698 = vld [vmem:[#allocation6 + $0x90] sm:$0xff]
    %v1699 = vld [vmem:[#allocation6 + $0xb8] sm:$0xff]
    %v1700 = vld [vmem:[#allocation6 + $0xc0] sm:$0xff]
    %v1701 = vld [vmem:[#allocation6 + $0xc8] sm:$0xff]
    %v1702 = vld [vmem:[#allocation6 + $0xd0] sm:$0xff]
    %v1703 = vld [vmem:[#allocation6 + $0xd8] sm:$0xff]
    %v1704 = vld [vmem:[#allocation6 + $0xe0] sm:$0xff]
    %v1705 = vld [vmem:[#allocation6 + $0x108] sm:$0xff]
    %v1706 = vld [vmem:[#allocation6 + $0x110] sm:$0xff]
    %v1707 = vld [vmem:[#allocation6 + $0x118] sm:$0xff]
    %v1708 = vld [vmem:[#allocation6 + $0x120] sm:$0xff]
    %v1709 = vld [vmem:[#allocation6 + $0x128] sm:$0xff]
    %v1710 = vld [vmem:[#allocation6 + $0x130] sm:$0xff]
    %v1711 = vld [vmem:[#allocation6 + $0x158] sm:$0xff]
    %v1712 = vld [vmem:[#allocation6 + $0x160] sm:$0xff]
    %v1713 = vld [vmem:[#allocation6 + $0x168] sm:$0xff]
    %v1714 = vld [vmem:[#allocation6 + $0x170] sm:$0xff]
    %v1715 = vld [vmem:[#allocation6 + $0x178] sm:$0xff]
    %v1716 = vld [vmem:[#allocation6 + $0x180] sm:$0xff]
    %v1717 = vld [vmem:[#allocation6 + $0x1a8] sm:$0xff]
    %v1718 = vld [vmem:[#allocation6 + $0x1b0] sm:$0xff]
    %v1719 = vld [vmem:[#allocation6 + $0x1b8] sm:$0xff]
    %v1720 = vld [vmem:[#allocation6 + $0x1c0] sm:$0xff]
    %v1721 = vld [vmem:[#allocation6 + $0x1c8] sm:$0xff]
    %v1722 = vld [vmem:[#allocation6 + $0x1d0] sm:$0xff]
    %v1723 = vld [vmem:[#allocation6 + $0x1f8] sm:$0xff]
    %v1724 = vld [vmem:[#allocation6 + $0x200] sm:$0xff]
    %v1725 = vld [vmem:[#allocation6 + $0x208] sm:$0xff]
    %v1726 = vld [vmem:[#allocation6 + $0x210] sm:$0xff]
    %v1727 = vld [vmem:[#allocation6 + $0x218] sm:$0xff]
    %v1728 = vld [vmem:[#allocation6 + $0x220] sm:$0xff]
    %v1729 = vld [vmem:[#allocation6 + $0x248] sm:$0xff]
    %v1730 = vld [vmem:[#allocation6 + $0x250] sm:$0xff]
    %v1731 = vld [vmem:[#allocation6 + $0x258] sm:$0xff]
    %v1732 = vld [vmem:[#allocation6 + $0x260] sm:$0xff]
    %v1733 = vld [vmem:[#allocation6 + $0x268] sm:$0xff]
    %v1734 = vld [vmem:[#allocation6 + $0x270] sm:$0xff]
    %v1735 = vld [vmem:[#allocation6 + $0x298] sm:$0xff]
    %v1736 = vld [vmem:[#allocation6 + $0x2a0] sm:$0xff]
    %v1737 = vld [vmem:[#allocation6 + $0x2a8] sm:$0xff]
    %v1738 = vld [vmem:[#allocation6 + $0x2b0] sm:$0xff]
    %v1739 = vld [vmem:[#allocation6 + $0x2b8] sm:$0xff]
    %v1740 = vld [vmem:[#allocation6 + $0x2c0] sm:$0xff]
    %v1741 = vld [vmem:[#allocation6 + $0x2e8] sm:$0xff]
    %v1742 = vld [vmem:[#allocation6 + $0x2f0] sm:$0xff]
    %v1743 = vld [vmem:[#allocation6 + $0x2f8] sm:$0xff]
    %v1744 = vld [vmem:[#allocation6 + $0x300] sm:$0xff]
    %v1745 = vld [vmem:[#allocation6 + $0x308] sm:$0xff]
    %v1746 = vld [vmem:[#allocation6 + $0x310] sm:$0xff]
    %v1747 = vld [vmem:[#allocation6 + $0x338] sm:$0xff]
    %v1748 = vld [vmem:[#allocation6 + $0x340] sm:$0xff]
    %v1749 = vld [vmem:[#allocation6 + $0x348] sm:$0xff]
    %v1750 = vld [vmem:[#allocation6 + $0x350] sm:$0xff]
    %v1751 = vld [vmem:[#allocation6 + $0x358] sm:$0xff]
    %v1752 = vld [vmem:[#allocation6 + $0x360] sm:$0xff]
    %v1753 = vld [vmem:[#allocation6 + $0x388] sm:$0xff]
    %v1754 = vld [vmem:[#allocation6 + $0x390] sm:$0xff]
    %v1755 = vld [vmem:[#allocation6 + $0x398] sm:$0xff]
    %v1756 = vld [vmem:[#allocation6 + $0x3a0] sm:$0xff]
    %v1757 = vld [vmem:[#allocation6 + $0x3a8] sm:$0xff]
    %v1758 = vld [vmem:[#allocation6 + $0x3b0] sm:$0xff]
    %v1759 = vld [vmem:[#allocation6 + $0x3d8] sm:$0xff]
    %v1760 = vld [vmem:[#allocation6 + $0x3e0] sm:$0xff]
    %v1761 = vld [vmem:[#allocation6 + $0x3e8] sm:$0xff]
    %v1762 = vld [vmem:[#allocation6 + $0x3f0] sm:$0xff]
    %v1763 = vld [vmem:[#allocation6 + $0x3f8] sm:$0xff]
    %v1764 = vld [vmem:[#allocation6 + $0x400] sm:$0xff]
    %v1765 = vld [vmem:[#allocation6 + $0x428] sm:$0xff]
    %v1766 = vld [vmem:[#allocation6 + $0x430] sm:$0xff]
    %v1767 = vld [vmem:[#allocation6 + $0x438] sm:$0xff]
    %v1768 = vld [vmem:[#allocation6 + $0x440] sm:$0xff]
    %v1769 = vld [vmem:[#allocation6 + $0x448] sm:$0xff]
    %v1770 = vld [vmem:[#allocation6 + $0x450] sm:$0xff]
    %v1771 = vld [vmem:[#allocation6 + $0x478] sm:$0xff]
    %v1772 = vld [vmem:[#allocation6 + $0x480] sm:$0xff]
    %v1773 = vld [vmem:[#allocation6 + $0x488] sm:$0xff]
    %v1774 = vld [vmem:[#allocation6 + $0x490] sm:$0xff]
    %v1775 = vld [vmem:[#allocation6 + $0x498] sm:$0xff]
    %v1776 = vld [vmem:[#allocation6 + $0x4a0] sm:$0xff]
    %v1777 = vld [vmem:[#allocation6 + $0x4c8] sm:$0xff]
    %v1778 = vld [vmem:[#allocation6 + $0x4d0] sm:$0xff]
    %v1779 = vld [vmem:[#allocation6 + $0x4d8] sm:$0xff]
    %v1780 = vld [vmem:[#allocation6 + $0x4e0] sm:$0xff]
    %v1781 = vld [vmem:[#allocation6 + $0x4e8] sm:$0xff]
    %v1782 = vld [vmem:[#allocation6 + $0x4f0] sm:$0xff]
    %1783 = vmatpush.msra.mxu0 %v1777
    %1784 = vmatpush.msra.mxu0 %v1771
    %1785 = vmatpush.msra.mxu0 %v1765
    %1786 = vmatpush.msra.mxu0 %v1759
    %1787 = vmatpush.msra.mxu0 %v1753
    %1788 = vmatpush.msra.mxu0 %v1747
    %1789 = vmatpush.msra.mxu0 %v1741
    %1790 = vmatpush.msra.mxu0 %v1735
    %1791 = vmatpush.msra.mxu0 %v1729
    %1792 = vmatpush.msra.mxu0 %v1723
    %1793 = vmatpush.msra.mxu0 %v1717
    %1794 = vmatpush.msra.mxu0 %v1711
    %1795 = vmatpush.msra.mxu0 %v1705
    %1796 = vmatpush.msra.mxu0 %v1699
    %1797 = vmatpush.msra.mxu0 %v1693
    %1798 = vmatpush.msra.mxu0 %v1687
    %1799 = vmatmul.f32.gmra.mxu0 %v1685
    %v1800 = vpop.f32.mrf.mxu0
    %v1801 = vadd.f32 0.0, %v1800
    %1802 = vdwg.mxu0
    %1803 = vmatpush.msra.mxu0 %v1778
    %1804 = vmatpush.msra.mxu0 %v1772
    %1805 = vmatpush.msra.mxu0 %v1766
    %1806 = vmatpush.msra.mxu0 %v1760
    %1807 = vmatpush.msra.mxu0 %v1754
    %1808 = vmatpush.msra.mxu0 %v1748
    %1809 = vmatpush.msra.mxu0 %v1742
    %1810 = vmatpush.msra.mxu0 %v1736
    %1811 = vmatpush.msra.mxu0 %v1730
    %1812 = vmatpush.msra.mxu0 %v1724
    %1813 = vmatpush.msra.mxu0 %v1718
    %1814 = vmatpush.msra.mxu0 %v1712
    %1815 = vmatpush.msra.mxu0 %v1706
    %1816 = vmatpush.msra.mxu0 %v1700
    %1817 = vmatpush.msra.mxu0 %v1694
    %1818 = vmatpush.msra.mxu0 %v1688
    %1819 = vmatmul.f32.gmra.mxu0 %v1685
    %v1820 = vpop.f32.mrf.mxu0
    %v1821 = vadd.f32 0.0, %v1820
    %1822 = vdwg.mxu0
    %1823 = vmatpush.msra.mxu0 %v1779
    %1824 = vmatpush.msra.mxu0 %v1773
    %1825 = vmatpush.msra.mxu0 %v1767
    %1826 = vmatpush.msra.mxu0 %v1761
    %1827 = vmatpush.msra.mxu0 %v1755
    %1828 = vmatpush.msra.mxu0 %v1749
    %1829 = vmatpush.msra.mxu0 %v1743
    %1830 = vmatpush.msra.mxu0 %v1737
    %1831 = vmatpush.msra.mxu0 %v1731
    %1832 = vmatpush.msra.mxu0 %v1725
    %1833 = vmatpush.msra.mxu0 %v1719
    %1834 = vmatpush.msra.mxu0 %v1713
    %1835 = vmatpush.msra.mxu0 %v1707
    %1836 = vmatpush.msra.mxu0 %v1701
    %1837 = vmatpush.msra.mxu0 %v1695
    %1838 = vmatpush.msra.mxu0 %v1689
    %1839 = vmatmul.f32.gmra.mxu0 %v1685
    %v1840 = vpop.f32.mrf.mxu0
    %v1841 = vadd.f32 0.0, %v1840
    %1842 = vdwg.mxu0
    %1843 = vmatpush.msra.mxu0 %v1780
    %1844 = vmatpush.msra.mxu0 %v1774
    %1845 = vmatpush.msra.mxu0 %v1768
    %1846 = vmatpush.msra.mxu0 %v1762
    %1847 = vmatpush.msra.mxu0 %v1756
    %1848 = vmatpush.msra.mxu0 %v1750
    %1849 = vmatpush.msra.mxu0 %v1744
    %1850 = vmatpush.msra.mxu0 %v1738
    %1851 = vmatpush.msra.mxu0 %v1732
    %1852 = vmatpush.msra.mxu0 %v1726
    %1853 = vmatpush.msra.mxu0 %v1720
    %1854 = vmatpush.msra.mxu0 %v1714
    %1855 = vmatpush.msra.mxu0 %v1708
    %1856 = vmatpush.msra.mxu0 %v1702
    %1857 = vmatpush.msra.mxu0 %v1696
    %1858 = vmatpush.msra.mxu0 %v1690
    %1859 = vmatmul.f32.gmra.mxu0 %v1685
    %v1860 = vpop.f32.mrf.mxu0
    %v1861 = vadd.f32 0.0, %v1860
    %1862 = vdwg.mxu0
    %1863 = vmatpush.msra.mxu0 %v1781
    %1864 = vmatpush.msra.mxu0 %v1775
    %1865 = vmatpush.msra.mxu0 %v1769
    %1866 = vmatpush.msra.mxu0 %v1763
    %1867 = vmatpush.msra.mxu0 %v1757
    %1868 = vmatpush.msra.mxu0 %v1751
    %1869 = vmatpush.msra.mxu0 %v1745
    %1870 = vmatpush.msra.mxu0 %v1739
    %1871 = vmatpush.msra.mxu0 %v1733
    %1872 = vmatpush.msra.mxu0 %v1727
    %1873 = vmatpush.msra.mxu0 %v1721
    %1874 = vmatpush.msra.mxu0 %v1715
    %1875 = vmatpush.msra.mxu0 %v1709
    %1876 = vmatpush.msra.mxu0 %v1703
    %1877 = vmatpush.msra.mxu0 %v1697
    %1878 = vmatpush.msra.mxu0 %v1691
    %1879 = vmatmul.f32.gmra.mxu0 %v1685
    %v1880 = vpop.f32.mrf.mxu0
    %v1881 = vadd.f32 0.0, %v1880
    %1882 = vdwg.mxu0
    %1883 = vmatpush.msra.mxu0 %v1782
    %1884 = vmatpush.msra.mxu0 %v1776
    %1885 = vmatpush.msra.mxu0 %v1770
    %1886 = vmatpush.msra.mxu0 %v1764
    %1887 = vmatpush.msra.mxu0 %v1758
    %1888 = vmatpush.msra.mxu0 %v1752
    %1889 = vmatpush.msra.mxu0 %v1746
    %1890 = vmatpush.msra.mxu0 %v1740
    %1891 = vmatpush.msra.mxu0 %v1734
    %1892 = vmatpush.msra.mxu0 %v1728
    %1893 = vmatpush.msra.mxu0 %v1722
    %1894 = vmatpush.msra.mxu0 %v1716
    %1895 = vmatpush.msra.mxu0 %v1710
    %1896 = vmatpush.msra.mxu0 %v1704
    %1897 = vmatpush.msra.mxu0 %v1698
    %1898 = vmatpush.msra.mxu0 %v1692
    %1899 = vmatmul.f32.gmra.mxu0 %v1685
    %v1900 = vpop.f32.mrf.mxu0
    %v1901 = vadd.f32 0.0, %v1900
    %1902 = vdwg.mxu0
    %v1903 = vadd.f32 %v1801, %v246
    %v1904 = vadd.f32 %v1821, %v247
    %v1905 = vadd.f32 %v1841, %v248
    %v1906 = vadd.f32 %v1903, %v1861
    %v1907 = vxor.u32 %v1906, 2147483648
    %v1908 = vmul.f32 %v1907, 1.442695
    %v1909 = vpow.pop %v1908
    %v1910 = vadd.f32 %v1909, 1.0
    %v1911 = vrcp.pop %v1910
    %v1912 = vmul.f32 %v1910, %v1911
    %v1913 = vsub.f32 1.0, %v1912
    %v1914 = vmul.f32 %v1911, %v1913
    %v1915 = vadd.f32 %v1911, %v1914
    %vm1916 = vweird.f32 %v1910
    %vm1917 = vweird.f32 %v1911
    %vm1918 = vmor %vm1916, %vm1917
    %v1919 = vsel %vm1918, %v1911, %v1915
    %v1920 = vand.u32 2147483647, %v1910
    %vm1921 = vcmp.eq.f32.partialorder %v1920, 8.507059e+37
    %v1922 = vand.u32 %v1910, 2147483648
    %v1923 = vor.u32 1.1754944e-38, %v1922
    %v1924 = vsel %vm1921, %v1923, %v1919
    %v1925 = vmul.f32 1.0, %v1924
    %v1926 = vadd.f32 %v1904, %v1881
    %v1927 = vxor.u32 %v1926, 2147483648
    %v1928 = vmul.f32 %v1927, 1.442695
    %v1929 = vpow.pop %v1928
    %v1930 = vadd.f32 %v1929, 1.0
    %v1931 = vrcp.pop %v1930
    %v1932 = vmul.f32 %v1930, %v1931
    %v1933 = vsub.f32 1.0, %v1932
    %v1934 = vmul.f32 %v1931, %v1933
    %v1935 = vadd.f32 %v1931, %v1934
    %vm1936 = vweird.f32 %v1930
    %vm1937 = vweird.f32 %v1931
    %vm1938 = vmor %vm1936, %vm1937
    %v1939 = vsel %vm1938, %v1931, %v1935
    %v1940 = vand.u32 2147483647, %v1930
    %vm1941 = vcmp.eq.f32.partialorder %v1940, 8.507059e+37
    %v1942 = vand.u32 %v1930, 2147483648
    %v1943 = vor.u32 1.1754944e-38, %v1942
    %v1944 = vsel %vm1941, %v1943, %v1939
    %v1945 = vmul.f32 1.0, %v1944
    %v1946 = vadd.f32 %v1901, %v242
    %v1947 = vmul.f32 %v1925, %v1946
    %v1948 = vadd.f32 %v1905, %v1947
    %v1949 = vtanh.pop %v1948
    %v1950 = vsub.f32 1.0, %v1945
    %v1951 = vmul.f32 %v1950, %v1949
    %v1952 = vmul.f32 %v1945, %v1685
    %v1953 = vadd.f32 %v1951, %v1952
    %1954 = vst [vmem:[#allocation2 + $0x4] sm:$0x3] %v1953
    %v1955 = vld [vmem:[#allocation6 + $0x18] sm:$0xff]
    %v1956 = vld [vmem:[#allocation6 + $0x20] sm:$0xff]
    %v1957 = vld [vmem:[#allocation6 + $0x28] sm:$0xff]
    %v1958 = vld [vmem:[#allocation6 + $0x30] sm:$0xff]
    %v1959 = vld [vmem:[#allocation6 + $0x38] sm:$0xff]
    %v1960 = vld [vmem:[#allocation6 + $0x40] sm:$0xff]
    %v1961 = vld [vmem:[#allocation6 + $0x68] sm:$0xff]
    %v1962 = vld [vmem:[#allocation6 + $0x70] sm:$0xff]
    %v1963 = vld [vmem:[#allocation6 + $0x78] sm:$0xff]
    %v1964 = vld [vmem:[#allocation6 + $0x80] sm:$0xff]
    %v1965 = vld [vmem:[#allocation6 + $0x88] sm:$0xff]
    %v1966 = vld [vmem:[#allocation6 + $0x90] sm:$0xff]
    %v1967 = vld [vmem:[#allocation6 + $0xb8] sm:$0xff]
    %v1968 = vld [vmem:[#allocation6 + $0xc0] sm:$0xff]
    %v1969 = vld [vmem:[#allocation6 + $0xc8] sm:$0xff]
    %v1970 = vld [vmem:[#allocation6 + $0xd0] sm:$0xff]
    %v1971 = vld [vmem:[#allocation6 + $0xd8] sm:$0xff]
    %v1972 = vld [vmem:[#allocation6 + $0xe0] sm:$0xff]
    %v1973 = vld [vmem:[#allocation6 + $0x108] sm:$0xff]
    %v1974 = vld [vmem:[#allocation6 + $0x110] sm:$0xff]
    %v1975 = vld [vmem:[#allocation6 + $0x118] sm:$0xff]
    %v1976 = vld [vmem:[#allocation6 + $0x120] sm:$0xff]
    %v1977 = vld [vmem:[#allocation6 + $0x128] sm:$0xff]
    %v1978 = vld [vmem:[#allocation6 + $0x130] sm:$0xff]
    %v1979 = vld [vmem:[#allocation6 + $0x158] sm:$0xff]
    %v1980 = vld [vmem:[#allocation6 + $0x160] sm:$0xff]
    %v1981 = vld [vmem:[#allocation6 + $0x168] sm:$0xff]
    %v1982 = vld [vmem:[#allocation6 + $0x170] sm:$0xff]
    %v1983 = vld [vmem:[#allocation6 + $0x178] sm:$0xff]
    %v1984 = vld [vmem:[#allocation6 + $0x180] sm:$0xff]
    %v1985 = vld [vmem:[#allocation6 + $0x1a8] sm:$0xff]
    %v1986 = vld [vmem:[#allocation6 + $0x1b0] sm:$0xff]
    %v1987 = vld [vmem:[#allocation6 + $0x1b8] sm:$0xff]
    %v1988 = vld [vmem:[#allocation6 + $0x1c0] sm:$0xff]
    %v1989 = vld [vmem:[#allocation6 + $0x1c8] sm:$0xff]
    %v1990 = vld [vmem:[#allocation6 + $0x1d0] sm:$0xff]
    %v1991 = vld [vmem:[#allocation6 + $0x1f8] sm:$0xff]
    %v1992 = vld [vmem:[#allocation6 + $0x200] sm:$0xff]
    %v1993 = vld [vmem:[#allocation6 + $0x208] sm:$0xff]
    %v1994 = vld [vmem:[#allocation6 + $0x210] sm:$0xff]
    %v1995 = vld [vmem:[#allocation6 + $0x218] sm:$0xff]
    %v1996 = vld [vmem:[#allocation6 + $0x220] sm:$0xff]
    %v1997 = vld [vmem:[#allocation6 + $0x248] sm:$0xff]
    %v1998 = vld [vmem:[#allocation6 + $0x250] sm:$0xff]
    %v1999 = vld [vmem:[#allocation6 + $0x258] sm:$0xff]
    %v2000 = vld [vmem:[#allocation6 + $0x260] sm:$0xff]
    %v2001 = vld [vmem:[#allocation6 + $0x268] sm:$0xff]
    %v2002 = vld [vmem:[#allocation6 + $0x270] sm:$0xff]
    %v2003 = vld [vmem:[#allocation6 + $0x298] sm:$0xff]
    %v2004 = vld [vmem:[#allocation6 + $0x2a0] sm:$0xff]
    %v2005 = vld [vmem:[#allocation6 + $0x2a8] sm:$0xff]
    %v2006 = vld [vmem:[#allocation6 + $0x2b0] sm:$0xff]
    %v2007 = vld [vmem:[#allocation6 + $0x2b8] sm:$0xff]
    %v2008 = vld [vmem:[#allocation6 + $0x2c0] sm:$0xff]
    %v2009 = vld [vmem:[#allocation6 + $0x2e8] sm:$0xff]
    %v2010 = vld [vmem:[#allocation6 + $0x2f0] sm:$0xff]
    %v2011 = vld [vmem:[#allocation6 + $0x2f8] sm:$0xff]
    %v2012 = vld [vmem:[#allocation6 + $0x300] sm:$0xff]
    %v2013 = vld [vmem:[#allocation6 + $0x308] sm:$0xff]
    %v2014 = vld [vmem:[#allocation6 + $0x310] sm:$0xff]
    %v2015 = vld [vmem:[#allocation6 + $0x338] sm:$0xff]
    %v2016 = vld [vmem:[#allocation6 + $0x340] sm:$0xff]
    %v2017 = vld [vmem:[#allocation6 + $0x348] sm:$0xff]
    %v2018 = vld [vmem:[#allocation6 + $0x350] sm:$0xff]
    %v2019 = vld [vmem:[#allocation6 + $0x358] sm:$0xff]
    %v2020 = vld [vmem:[#allocation6 + $0x360] sm:$0xff]
    %v2021 = vld [vmem:[#allocation6 + $0x388] sm:$0xff]
    %v2022 = vld [vmem:[#allocation6 + $0x390] sm:$0xff]
    %v2023 = vld [vmem:[#allocation6 + $0x398] sm:$0xff]
    %v2024 = vld [vmem:[#allocation6 + $0x3a0] sm:$0xff]
    %v2025 = vld [vmem:[#allocation6 + $0x3a8] sm:$0xff]
    %v2026 = vld [vmem:[#allocation6 + $0x3b0] sm:$0xff]
    %v2027 = vld [vmem:[#allocation6 + $0x3d8] sm:$0xff]
    %v2028 = vld [vmem:[#allocation6 + $0x3e0] sm:$0xff]
    %v2029 = vld [vmem:[#allocation6 + $0x3e8] sm:$0xff]
    %v2030 = vld [vmem:[#allocation6 + $0x3f0] sm:$0xff]
    %v2031 = vld [vmem:[#allocation6 + $0x3f8] sm:$0xff]
    %v2032 = vld [vmem:[#allocation6 + $0x400] sm:$0xff]
    %v2033 = vld [vmem:[#allocation6 + $0x428] sm:$0xff]
    %v2034 = vld [vmem:[#allocation6 + $0x430] sm:$0xff]
    %v2035 = vld [vmem:[#allocation6 + $0x438] sm:$0xff]
    %v2036 = vld [vmem:[#allocation6 + $0x440] sm:$0xff]
    %v2037 = vld [vmem:[#allocation6 + $0x448] sm:$0xff]
    %v2038 = vld [vmem:[#allocation6 + $0x450] sm:$0xff]
    %v2039 = vld [vmem:[#allocation6 + $0x478] sm:$0xff]
    %v2040 = vld [vmem:[#allocation6 + $0x480] sm:$0xff]
    %v2041 = vld [vmem:[#allocation6 + $0x488] sm:$0xff]
    %v2042 = vld [vmem:[#allocation6 + $0x490] sm:$0xff]
    %v2043 = vld [vmem:[#allocation6 + $0x498] sm:$0xff]
    %v2044 = vld [vmem:[#allocation6 + $0x4a0] sm:$0xff]
    %v2045 = vld [vmem:[#allocation6 + $0x4c8] sm:$0xff]
    %v2046 = vld [vmem:[#allocation6 + $0x4d0] sm:$0xff]
    %v2047 = vld [vmem:[#allocation6 + $0x4d8] sm:$0xff]
    %v2048 = vld [vmem:[#allocation6 + $0x4e0] sm:$0xff]
    %v2049 = vld [vmem:[#allocation6 + $0x4e8] sm:$0xff]
    %v2050 = vld [vmem:[#allocation6 + $0x4f0] sm:$0xff]
    %2051 = vmatpush.msra.mxu0 %v2045
    %2052 = vmatpush.msra.mxu0 %v2039
    %2053 = vmatpush.msra.mxu0 %v2033
    %2054 = vmatpush.msra.mxu0 %v2027
    %2055 = vmatpush.msra.mxu0 %v2021
    %2056 = vmatpush.msra.mxu0 %v2015
    %2057 = vmatpush.msra.mxu0 %v2009
    %2058 = vmatpush.msra.mxu0 %v2003
    %2059 = vmatpush.msra.mxu0 %v1997
    %2060 = vmatpush.msra.mxu0 %v1991
    %2061 = vmatpush.msra.mxu0 %v1985
    %2062 = vmatpush.msra.mxu0 %v1979
    %2063 = vmatpush.msra.mxu0 %v1973
    %2064 = vmatpush.msra.mxu0 %v1967
    %2065 = vmatpush.msra.mxu0 %v1961
    %2066 = vmatpush.msra.mxu0 %v1955
    %2067 = vmatmul.f32.gmra.mxu0 %v1953
    %v2068 = vpop.f32.mrf.mxu0
    %v2069 = vadd.f32 0.0, %v2068
    %2070 = vdwg.mxu0
    %2071 = vmatpush.msra.mxu0 %v2046
    %2072 = vmatpush.msra.mxu0 %v2040
    %2073 = vmatpush.msra.mxu0 %v2034
    %2074 = vmatpush.msra.mxu0 %v2028
    %2075 = vmatpush.msra.mxu0 %v2022
    %2076 = vmatpush.msra.mxu0 %v2016
    %2077 = vmatpush.msra.mxu0 %v2010
    %2078 = vmatpush.msra.mxu0 %v2004
    %2079 = vmatpush.msra.mxu0 %v1998
    %2080 = vmatpush.msra.mxu0 %v1992
    %2081 = vmatpush.msra.mxu0 %v1986
    %2082 = vmatpush.msra.mxu0 %v1980
    %2083 = vmatpush.msra.mxu0 %v1974
    %2084 = vmatpush.msra.mxu0 %v1968
    %2085 = vmatpush.msra.mxu0 %v1962
    %2086 = vmatpush.msra.mxu0 %v1956
    %2087 = vmatmul.f32.gmra.mxu0 %v1953
    %v2088 = vpop.f32.mrf.mxu0
    %v2089 = vadd.f32 0.0, %v2088
    %2090 = vdwg.mxu0
    %2091 = vmatpush.msra.mxu0 %v2047
    %2092 = vmatpush.msra.mxu0 %v2041
    %2093 = vmatpush.msra.mxu0 %v2035
    %2094 = vmatpush.msra.mxu0 %v2029
    %2095 = vmatpush.msra.mxu0 %v2023
    %2096 = vmatpush.msra.mxu0 %v2017
    %2097 = vmatpush.msra.mxu0 %v2011
    %2098 = vmatpush.msra.mxu0 %v2005
    %2099 = vmatpush.msra.mxu0 %v1999
    %2100 = vmatpush.msra.mxu0 %v1993
    %2101 = vmatpush.msra.mxu0 %v1987
    %2102 = vmatpush.msra.mxu0 %v1981
    %2103 = vmatpush.msra.mxu0 %v1975
    %2104 = vmatpush.msra.mxu0 %v1969
    %2105 = vmatpush.msra.mxu0 %v1963
    %2106 = vmatpush.msra.mxu0 %v1957
    %2107 = vmatmul.f32.gmra.mxu0 %v1953
    %v2108 = vpop.f32.mrf.mxu0
    %v2109 = vadd.f32 0.0, %v2108
    %2110 = vdwg.mxu0
    %2111 = vmatpush.msra.mxu0 %v2048
    %2112 = vmatpush.msra.mxu0 %v2042
    %2113 = vmatpush.msra.mxu0 %v2036
    %2114 = vmatpush.msra.mxu0 %v2030
    %2115 = vmatpush.msra.mxu0 %v2024
    %2116 = vmatpush.msra.mxu0 %v2018
    %2117 = vmatpush.msra.mxu0 %v2012
    %2118 = vmatpush.msra.mxu0 %v2006
    %2119 = vmatpush.msra.mxu0 %v2000
    %2120 = vmatpush.msra.mxu0 %v1994
    %2121 = vmatpush.msra.mxu0 %v1988
    %2122 = vmatpush.msra.mxu0 %v1982
    %2123 = vmatpush.msra.mxu0 %v1976
    %2124 = vmatpush.msra.mxu0 %v1970
    %2125 = vmatpush.msra.mxu0 %v1964
    %2126 = vmatpush.msra.mxu0 %v1958
    %2127 = vmatmul.f32.gmra.mxu0 %v1953
    %v2128 = vpop.f32.mrf.mxu0
    %v2129 = vadd.f32 0.0, %v2128
    %2130 = vdwg.mxu0
    %2131 = vmatpush.msra.mxu0 %v2049
    %2132 = vmatpush.msra.mxu0 %v2043
    %2133 = vmatpush.msra.mxu0 %v2037
    %2134 = vmatpush.msra.mxu0 %v2031
    %2135 = vmatpush.msra.mxu0 %v2025
    %2136 = vmatpush.msra.mxu0 %v2019
    %2137 = vmatpush.msra.mxu0 %v2013
    %2138 = vmatpush.msra.mxu0 %v2007
    %2139 = vmatpush.msra.mxu0 %v2001
    %2140 = vmatpush.msra.mxu0 %v1995
    %2141 = vmatpush.msra.mxu0 %v1989
    %2142 = vmatpush.msra.mxu0 %v1983
    %2143 = vmatpush.msra.mxu0 %v1977
    %2144 = vmatpush.msra.mxu0 %v1971
    %2145 = vmatpush.msra.mxu0 %v1965
    %2146 = vmatpush.msra.mxu0 %v1959
    %2147 = vmatmul.f32.gmra.mxu0 %v1953
    %v2148 = vpop.f32.mrf.mxu0
    %v2149 = vadd.f32 0.0, %v2148
    %2150 = vdwg.mxu0
    %2151 = vmatpush.msra.mxu0 %v2050
    %2152 = vmatpush.msra.mxu0 %v2044
    %2153 = vmatpush.msra.mxu0 %v2038
    %2154 = vmatpush.msra.mxu0 %v2032
    %2155 = vmatpush.msra.mxu0 %v2026
    %2156 = vmatpush.msra.mxu0 %v2020
    %2157 = vmatpush.msra.mxu0 %v2014
    %2158 = vmatpush.msra.mxu0 %v2008
    %2159 = vmatpush.msra.mxu0 %v2002
    %2160 = vmatpush.msra.mxu0 %v1996
    %2161 = vmatpush.msra.mxu0 %v1990
    %2162 = vmatpush.msra.mxu0 %v1984
    %2163 = vmatpush.msra.mxu0 %v1978
    %2164 = vmatpush.msra.mxu0 %v1972
    %2165 = vmatpush.msra.mxu0 %v1966
    %2166 = vmatpush.msra.mxu0 %v1960
    %2167 = vmatmul.f32.gmra.mxu0 %v1953
    %v2168 = vpop.f32.mrf.mxu0
    %v2169 = vadd.f32 0.0, %v2168
    %2170 = vdwg.mxu0
    %v2171 = vadd.f32 %v2069, %v246
    %v2172 = vadd.f32 %v2089, %v247
    %v2173 = vadd.f32 %v2109, %v248
    %v2174 = vadd.f32 %v2171, %v2129
    %v2175 = vxor.u32 %v2174, 2147483648
    %v2176 = vmul.f32 %v2175, 1.442695
    %v2177 = vpow.pop %v2176
    %v2178 = vadd.f32 %v2177, 1.0
    %v2179 = vrcp.pop %v2178
    %v2180 = vmul.f32 %v2178, %v2179
    %v2181 = vsub.f32 1.0, %v2180
    %v2182 = vmul.f32 %v2179, %v2181
    %v2183 = vadd.f32 %v2179, %v2182
    %vm2184 = vweird.f32 %v2178
    %vm2185 = vweird.f32 %v2179
    %vm2186 = vmor %vm2184, %vm2185
    %v2187 = vsel %vm2186, %v2179, %v2183
    %v2188 = vand.u32 2147483647, %v2178
    %vm2189 = vcmp.eq.f32.partialorder %v2188, 8.507059e+37
    %v2190 = vand.u32 %v2178, 2147483648
    %v2191 = vor.u32 1.1754944e-38, %v2190
    %v2192 = vsel %vm2189, %v2191, %v2187
    %v2193 = vmul.f32 1.0, %v2192
    %v2194 = vadd.f32 %v2172, %v2149
    %v2195 = vxor.u32 %v2194, 2147483648
    %v2196 = vmul.f32 %v2195, 1.442695
    %v2197 = vpow.pop %v2196
    %v2198 = vadd.f32 %v2197, 1.0
    %v2199 = vrcp.pop %v2198
    %v2200 = vmul.f32 %v2198, %v2199
    %v2201 = vsub.f32 1.0, %v2200
    %v2202 = vmul.f32 %v2199, %v2201
    %v2203 = vadd.f32 %v2199, %v2202
    %vm2204 = vweird.f32 %v2198
    %vm2205 = vweird.f32 %v2199
    %vm2206 = vmor %vm2204, %vm2205
    %v2207 = vsel %vm2206, %v2199, %v2203
    %v2208 = vand.u32 2147483647, %v2198
    %vm2209 = vcmp.eq.f32.partialorder %v2208, 8.507059e+37
    %v2210 = vand.u32 %v2198, 2147483648
    %v2211 = vor.u32 1.1754944e-38, %v2210
    %v2212 = vsel %vm2209, %v2211, %v2207
    %v2213 = vmul.f32 1.0, %v2212
    %v2214 = vadd.f32 %v2169, %v242
    %v2215 = vmul.f32 %v2193, %v2214
    %v2216 = vadd.f32 %v2173, %v2215
    %v2217 = vtanh.pop %v2216
    %v2218 = vsub.f32 1.0, %v2213
    %v2219 = vmul.f32 %v2218, %v2217
    %v2220 = vmul.f32 %v2213, %v1953
    %v2221 = vadd.f32 %v2219, %v2220
    %2222 = vst [vmem:[#allocation2 + $0x6] sm:$0x3] %v2221
    %v2223 = vld [vmem:[#allocation2] sm:$0xff]
    %v2224 = vld [vmem:[#allocation6 + $0x48] sm:$0xff]
    %v2225 = vld [vmem:[#allocation6 + $0x98] sm:$0xff]
    %v2226 = vld [vmem:[#allocation6 + $0xe8] sm:$0xff]
    %v2227 = vld [vmem:[#allocation6 + $0x138] sm:$0xff]
    %v2228 = vld [vmem:[#allocation6 + $0x188] sm:$0xff]
    %v2229 = vld [vmem:[#allocation6 + $0x1d8] sm:$0xff]
    %v2230 = vld [vmem:[#allocation6 + $0x228] sm:$0xff]
    %v2231 = vld [vmem:[#allocation6 + $0x278] sm:$0xff]
    %v2232 = vld [vmem:[#allocation6 + $0x2c8] sm:$0xff]
    %v2233 = vld [vmem:[#allocation6 + $0x318] sm:$0xff]
    %v2234 = vld [vmem:[#allocation6 + $0x368] sm:$0xff]
    %v2235 = vld [vmem:[#allocation6 + $0x3b8] sm:$0xff]
    %v2236 = vld [vmem:[#allocation6 + $0x408] sm:$0xff]
    %v2237 = vld [vmem:[#allocation6 + $0x458] sm:$0xff]
    %v2238 = vld [vmem:[#allocation6 + $0x4a8] sm:$0xff]
    %v2239 = vld [vmem:[#allocation6 + $0x4f8] sm:$0xff]
    %v2240 = vld [vmem:[%s3 + $0xb] sm:$0x1]
    %v2242 = vperm.slane %v2240, 0
    %2244 = vmatpush.msra.mxu0 %v2239
    %2245 = vmatpush.msra.mxu0 %v2238
    %2246 = vmatpush.msra.mxu0 %v2237
    %2247 = vmatpush.msra.mxu0 %v2236
    %2248 = vmatpush.msra.mxu0 %v2235
    %2249 = vmatpush.msra.mxu0 %v2234
    %2250 = vmatpush.msra.mxu0 %v2233
    %2251 = vmatpush.msra.mxu0 %v2232
    %2252 = vmatpush.msra.mxu0 %v2231
    %2253 = vmatpush.msra.mxu0 %v2230
    %2254 = vmatpush.msra.mxu0 %v2229
    %2255 = vmatpush.msra.mxu0 %v2228
    %2256 = vmatpush.msra.mxu0 %v2227
    %2257 = vmatpush.msra.mxu0 %v2226
    %2258 = vmatpush.msra.mxu0 %v2225
    %2259 = vmatpush.msra.mxu0 %v2224
    %2260 = vmatmul.f32.gmra.mxu0 %v2223
    %v2261 = vpop.f32.mrf.mxu0
    %v2262 = vadd.f32 %v2242, %v2261
    %2263 = vdwg.mxu0
    %2264 = vst [vmem:[#allocation8] sm:$0xff] %v2262
    // Predicated region
    $region26: #{tpu_custom_call.1} parent=1 // pred_check
      _
    $region27: #{tpu_custom_call.1} parent=1 // pred_check_branch
      %2266 = sbr.rel (0) target = $region29
    $region28: #{tpu_custom_call.1} parent=1 // pred_region
      %2268 = vsyncadd [#allocation5], 0
      %s2270 = sshll.u32 [#allocation8], 4
      %s2271 = int_to_ptr.vmem [resolvable:$true] %s2270
      %s2272 = sshll.u32 %s4, 4
      %s2273 = int_to_ptr.hbm [resolvable:$true] %s2272
      %2275 = dma.vmem_to_hbm [thread:$0]  %s2271, 128, %s2273, [#allocation5]
    $region29: #{tpu_custom_call.1} parent=1 // pred_fallthru
      _
    // Predicated region
    $region30: #{tpu_custom_call.1} parent=1 // pred_check
      _
    $region31: #{tpu_custom_call.1} parent=1 // pred_check_branch
      %2277 = sbr.rel (0) target = $region33
    $region32: #{tpu_custom_call.1} parent=1 // pred_region
      %2279 = dma.done [#allocation5], 128
    $region33: #{tpu_custom_call.1} parent=1 // pred_fallthru
      _
    %2280 = vsyncpa [#allocation4], 1
    %2281 = vsyncpa [#allocation7], 1
    %2282 = vsyncpa [#allocation5], 1

</llo_original>
